<compile_context>
chip_gen: v7x
topology: tpu7x:2x2x1
jax: 0.10.0
libtpu: 0.0.40
codegen_flags: <defaults>
</compile_context>

<pallas_src>
import jax
import jax.numpy as jnp
from jax.experimental import pallas as pl
from jax.experimental.pallas import tpu as pltpu


def _pick_tile_h(H):
    """Row-tile height TH: TH | H, TH even (2-row halo block index = (t+1)*TH/2 must be
    integral) and a multiple of 8 when TH < H (sublane-aligned output block)."""
    for th in (8, 16):
        if H % th == 0:
            return th
    if H % 2 == 0:
        return H
    # TODO(synk): odd input heights would need single-row halo BlockSpecs.
    raise NotImplementedError("Upsample Pallas kernel requires an even input height")


def _phase_weights(w_oihw):
    """Fold the 2x nearest upsample into the 3x3 conv weights.

    For output pixel (2i+a, 2j+b) the 3x3 conv on the upsampled image collapses to a 2x2
    conv on the original zero-padded input.  For each output row phase `a` we build one
    im2col weight matrix of shape (6C, 2C):
      K index: (r*3 + cc)*C + ci   r  in {0,1}:  row shift inside the padded window
                                   cc in {0,1,2}: column shift inside the padded window
      N index: b*C + co            b  in {0,1}:  output column phase
    so a single MXU dot per row phase produces both interleaved column phases at once.
    """
    c_out, c_in, _, _ = w_oihw.shape
    assert c_out == c_in, "Upsample uses Conv2d(C, C, 3, 3)"
    C = c_in
    w_hwio = jnp.transpose(w_oihw, (2, 3, 1, 0)).astype(jnp.float32)  # (3, 3, Ci, Co)

    def collapsed_tap(phase, k):
        # which tap (0 or 1) of the collapsed 2x2 kernel the original 3x3 tap k lands on
        return (phase + k - 1) // 2 + 1 - phase

    zero = jnp.zeros((C, C), jnp.float32)
    per_phase = []
    for a in range(2):
        blocks = [[zero, zero] for _ in range(6)]          # [r*3+cc][b] -> (Ci, Co)
        for b in range(2):
            for kh in range(3):
                r = collapsed_tap(a, kh)
                for kw in range(3):
                    cc = collapsed_tap(b, kw) + b          # column shift in the 3-wide window
                    blocks[r * 3 + cc][b] = blocks[r * 3 + cc][b] + w_hwio[kh, kw]
        per_phase.append(jnp.concatenate(
            [jnp.concatenate(row, axis=1) for row in blocks], axis=0))  # (6C, 2C)
    return jnp.stack(per_phase)                            # (2, 6C, 2C)


def _upsample_conv3x3_kernel(xm_ref, xh_ref, w_ref, b_ref, o_ref, xw_scr, col_scr):
    """Fused nearest-2x upsample + 3x3 SAME conv for one (batch, row-tile) grid step.

    xm_ref : (1, TH, W+2, C)  rows [t*TH, t*TH+TH) of the zero-padded input
    xh_ref : (1, 2,  W+2, C)  2-row halo just below the main rows
    w_ref  : (2, 6C, 2C)      per-row-phase im2col weights (upsample folded in)
    b_ref  : (1, 2C)          bias, duplicated for the two column phases (f32)
    o_ref  : (1, TH, 4*W*C)   output rows [2*t*TH, 2*t*TH+2*TH); lane-dense:
                              lane = a*2*W*C + (2j+b)*C + co
    xw_scr : (TH+2, W+2, C)   VMEM scratch: assembled input window
    col_scr: (TH*W, 6C)       VMEM scratch: im2col patches
    """
    _, TH, Wp, C = xm_ref.shape
    W = Wp - 2

    # Assemble the (TH+2)-row working window once per grid step.
    xw_scr[0:TH] = xm_ref[0]
    xw_scr[TH:TH + 2] = xh_ref[0]

    bias = b_ref[...].astype(jnp.float32)                  # (1, 2C)

    for a in range(2):                                     # output row phase: rows 2i+a
        # im2col: 2 row shifts x 3 column shifts -> K = 6C.
        # (For C >= 128 a per-tap jnp.dot accumulation avoids these copies and the
        #  zero-padded weight blocks; at small C one K=6C dot beats many K=C MXU pushes.)
        for r in range(2):
            for cc in range(3):
                k = r * 3 + cc
                col_scr[:, k * C:(k + 1) * C] = (
                    xw_scr[a + r:a + r + TH, cc:cc + W, :].reshape(TH * W, C))

        # One MXU dot per row phase: (TH*W, 6C) x (6C, 2C) -> both column phases at once,
        # accumulated in f32 inside the MXU.
        res = (jnp.dot(col_scr[...], w_ref[a], preferred_element_type=jnp.float32)
               + bias).astype(o_ref.dtype)                 # (TH*W, 2C)
        res3 = res.reshape(TH, W, 2 * C)                   # leading-dim split only

        # Lane-dense store: row phase `a` owns lanes [a*2WC, (a+1)*2WC) of each output
        # row; write one 2C-wide column-pair slab per j (static slices only).
        base = a * 2 * W * C
        for j in range(W):
            o_ref[0, :, base + j * 2 * C: base + (j + 1) * 2 * C] = res3[:, j, :]


def upsample_forward(x_nchw, w_oihw=None, b=None, with_conv=True):
    """Forward pass equivalent to the PyTorch Upsample module (NCHW in/out)."""
    N, C, H, W = x_nchw.shape

    if not with_conv:
        # Pure data movement (zero FLOPs): nearest 2x upsample stays in plain JAX.
        # TODO(synk): no arithmetic hot path here, so no Pallas kernel for this branch.
        up = jnp.broadcast_to(x_nchw[:, :, :, None, :, None], (N, C, H, 2, W, 2))
        return up.reshape(N, C, 2 * H, 2 * W)

    th = _pick_tile_h(H)
    n_row_tiles = H // th
    lane_out = 4 * W * C                                  # one lane-dense output row pair

    # NCHW -> NHWC so channels land on the TPU lane axis.
    # TODO(synk): these two HBM transposes disappear if the surrounding model stays NHWC.
    x = jnp.transpose(x_nchw, (0, 2, 3, 1))
    # Zero-pad the *small, un-upsampled* input only (SAME padding of the fused conv).
    x_pad = jnp.pad(x, ((0, 0), (1, 1), (1, 1), (0, 0)))   # (N, H+2, W+2, C)

    w_phase = _phase_weights(w_oihw).astype(x.dtype)       # (2, 6C, 2C)
    b2 = jnp.concatenate([b, b]).reshape(1, 2 * C).astype(jnp.float32)

    # VMEM hint: double-buffered blocks + scratch, clamped for v7x's 64 MiB VMEM.
    itemsize = jnp.dtype(x.dtype).itemsize
    in_blk = (th + 2) * (W + 2) * C * itemsize
    out_blk = th * lane_out * itemsize
    wgt = (2 * 6 * C * 2 * C) * itemsize + 2 * C * 4
    scratch = ((th + 2) * (W + 2) * C + th * W * 6 * C) * itemsize
    est = 2 * (in_blk + out_blk + wgt) + scratch
    vmem_limit = int(max(32 * 1024 * 1024, min(48 * 1024 * 1024, 2 * est)))

    out_flat = pl.pallas_call(
        _upsample_conv3x3_kernel,
        out_shape=jax.ShapeDtypeStruct((N, H, lane_out), x.dtype),
        grid=(N, n_row_tiles),
        in_specs=[
            # main rows of the padded input: x_pad[t*TH : t*TH + TH]
            pl.BlockSpec((1, th, W + 2, C), lambda n, t: (n, t, 0, 0)),
            # 2-row halo just below them:    x_pad[t*TH + TH : t*TH + TH + 2]
            pl.BlockSpec((1, 2, W + 2, C), lambda n, t: (n, (t + 1) * (th // 2), 0, 0)),
            pl.BlockSpec((2, 6 * C, 2 * C), lambda n, t: (0, 0, 0)),
            pl.BlockSpec((1, 2 * C), lambda n, t: (0, 0)),
        ],
        out_specs=pl.BlockSpec((1, th, lane_out), lambda n, t: (n, t, 0)),
        scratch_shapes=[
            pltpu.VMEM((th + 2, W + 2, C), x.dtype),       # assembled input window
            pltpu.VMEM((th * W, 6 * C), x.dtype),          # im2col patches
        ],
        compiler_params=pltpu.CompilerParams(
            dimension_semantics=("parallel", "parallel"),
            vmem_limit_bytes=vmem_limit),
    )(x_pad, x_pad, w_phase, b2)

    # (N, H, 4WC) -> (N, 2H, 2W, C) is a free reshape (row-major order already matches).
    out_nhwc = out_flat.reshape(N, 2 * H, 2 * W, C)
    return jnp.transpose(out_nhwc, (0, 3, 1, 2))           # NHWC -> NCHW


if __name__ == "__main__":
    key = jax.random.PRNGKey(0)
    kx, kw, kb = jax.random.split(key, 3)

    N, C, H, W = 2, 4, 16, 16
    x = jax.random.normal(kx, (N, C, H, W), dtype=jnp.float32)

    # Deterministic synthetic Conv2d(C, C, 3, 3) parameters (OIHW weight, bias).
    fan_in = C * 3 * 3
    bound = 1.0 / (fan_in ** 0.5)
    w = jax.random.uniform(kw, (C, C, 3, 3), jnp.float32, -bound, bound)
    b = jax.random.uniform(kb, (C,), jnp.float32, -bound, bound)

    out = upsample_forward(x, w, b, with_conv=True)
    out = jax.block_until_ready(out)
    assert out.shape == (N, C, 2 * H, 2 * W), out.shape

    # Pure-JAX reference: nearest 2x upsample + SAME 3x3 conv.
    x_nhwc = jnp.transpose(x, (0, 2, 3, 1))
    up_ref = jnp.repeat(jnp.repeat(x_nhwc, 2, axis=1), 2, axis=2)
    ref = jax.lax.conv_general_dilated(
        up_ref, jnp.transpose(w, (2, 3, 1, 0)),
        window_strides=(1, 1), padding="SAME",
        dimension_numbers=("NHWC", "HWIO", "NHWC"),
        precision=jax.lax.Precision.HIGHEST) + b.reshape(1, 1, 1, C)
    ref = jnp.transpose(ref, (0, 3, 1, 2))
    max_err = float(jnp.max(jnp.abs(out - ref)))
    assert jnp.allclose(out, ref, rtol=1e-5, atol=1e-4), f"mismatch vs reference: {max_err}"

    # with_conv=False path (pure data movement, stays in JAX).
    out_nc = jax.block_until_ready(upsample_forward(x, with_conv=False))
    ref_nc = jnp.repeat(jnp.repeat(x, 2, axis=2), 2, axis=3)
    assert jnp.allclose(out_nc, ref_nc), "nearest-upsample mismatch"

    print("KERNEL_OK")
</pallas_src>

<mosaic_0001>
module attributes {stable_mosaic.version = 11 : i64} {
  func.func @_upsample_conv3x3_kernel(%arg0: i32, %arg1: i32, %arg2: memref<1x8x18x4xf32, #tpu.memory_space<vmem>>, %arg3: memref<1x2x18x4xf32, #tpu.memory_space<vmem>>, %arg4: memref<2x24x8xf32, #tpu.memory_space<vmem>>, %arg5: memref<1x8xf32, #tpu.memory_space<vmem>>, %arg6: memref<1x8x256xf32, #tpu.memory_space<vmem>>, %arg7: memref<10x18x4xf32, #tpu.memory_space<vmem>>, %arg8: memref<128x24xf32, #tpu.memory_space<vmem>>) attributes {dimension_semantics = [#tpu.dimension_semantics<parallel>, #tpu.dimension_semantics<parallel>], iteration_bounds = array<i64: 2, 2>, scalar_prefetch = 0 : i64, scratch_operands = 2 : i64, tpu.core_type = #tpu.core_type<tc>, window_params = [{transform_indices = @transform_0, window_bounds = array<i64: 1, 8, 18, 4>}, {transform_indices = @transform_1, window_bounds = array<i64: 1, 2, 18, 4>}, {pipeline_mode = #tpu.pipeline_mode<synchronous>, transform_indices = @transform_2, window_bounds = array<i64: 2, 24, 8>}, {pipeline_mode = #tpu.pipeline_mode<synchronous>, transform_indices = @transform_3, window_bounds = array<i64: 1, 8>}, {transform_indices = @transform_4, window_bounds = array<i64: 1, 8, 256>}]} {
    %c0 = arith.constant 0 : index
    %c0_0 = arith.constant 0 : index
    %c0_1 = arith.constant 0 : index
    %c0_2 = arith.constant 0 : index
    %0 = vector.load %arg2[%c0, %c0_0, %c0_1, %c0_2] : memref<1x8x18x4xf32, #tpu.memory_space<vmem>>, vector<1x8x18x4xf32>
    %1 = vector.shape_cast %0 : vector<1x8x18x4xf32> to vector<8x18x4xf32>
    %c0_3 = arith.constant 0 : index
    %c0_4 = arith.constant 0 : index
    %c0_5 = arith.constant 0 : index
    %2 = vector.load %arg7[%c0_3, %c0_4, %c0_5] : memref<10x18x4xf32, #tpu.memory_space<vmem>>, vector<8x18x4xf32>
    tpu.vector_store %arg7[%c0_3, %c0_4, %c0_5], %1 {strides = array<i32>} : memref<10x18x4xf32, #tpu.memory_space<vmem>>, vector<8x18x4xf32>,
    %c0_6 = arith.constant 0 : index
    %c0_7 = arith.constant 0 : index
    %c0_8 = arith.constant 0 : index
    %c0_9 = arith.constant 0 : index
    %3 = vector.load %arg3[%c0_6, %c0_7, %c0_8, %c0_9] : memref<1x2x18x4xf32, #tpu.memory_space<vmem>>, vector<1x2x18x4xf32>
    %4 = vector.shape_cast %3 : vector<1x2x18x4xf32> to vector<2x18x4xf32>
    %c8 = arith.constant 8 : index
    %c0_10 = arith.constant 0 : index
    %c0_11 = arith.constant 0 : index
    %5 = vector.load %arg7[%c8, %c0_10, %c0_11] : memref<10x18x4xf32, #tpu.memory_space<vmem>>, vector<2x18x4xf32>
    tpu.vector_store %arg7[%c8, %c0_10, %c0_11], %4 {strides = array<i32>} : memref<10x18x4xf32, #tpu.memory_space<vmem>>, vector<2x18x4xf32>,
    %c0_12 = arith.constant 0 : index
    %c0_13 = arith.constant 0 : index
    %6 = vector.load %arg5[%c0_12, %c0_13] : memref<1x8xf32, #tpu.memory_space<vmem>>, vector<1x8xf32>
    %c0_14 = arith.constant 0 : index
    %c0_15 = arith.constant 0 : index
    %c0_16 = arith.constant 0 : index
    %7 = vector.load %arg7[%c0_14, %c0_15, %c0_16] : memref<10x18x4xf32, #tpu.memory_space<vmem>>, vector<8x16x4xf32>
    %8 = vector.shape_cast %7 : vector<8x16x4xf32> to vector<128x4xf32>
    %c0_17 = arith.constant 0 : index
    %c0_18 = arith.constant 0 : index
    %9 = vector.load %arg8[%c0_17, %c0_18] : memref<128x24xf32, #tpu.memory_space<vmem>>, vector<128x4xf32>
    tpu.vector_store %arg8[%c0_17, %c0_18], %8 {strides = array<i32>} : memref<128x24xf32, #tpu.memory_space<vmem>>, vector<128x4xf32>,
    %c0_19 = arith.constant 0 : index
    %c1 = arith.constant 1 : index
    %c0_20 = arith.constant 0 : index
    %10 = vector.load %arg7[%c0_19, %c1, %c0_20] : memref<10x18x4xf32, #tpu.memory_space<vmem>>, vector<8x16x4xf32>
    %11 = vector.shape_cast %10 : vector<8x16x4xf32> to vector<128x4xf32>
    %c0_21 = arith.constant 0 : index
    %c4 = arith.constant 4 : index
    %12 = vector.load %arg8[%c0_21, %c4] : memref<128x24xf32, #tpu.memory_space<vmem>>, vector<128x4xf32>
    tpu.vector_store %arg8[%c0_21, %c4], %11 {strides = array<i32>} : memref<128x24xf32, #tpu.memory_space<vmem>>, vector<128x4xf32>,
    %c0_22 = arith.constant 0 : index
    %c2 = arith.constant 2 : index
    %c0_23 = arith.constant 0 : index
    %13 = vector.load %arg7[%c0_22, %c2, %c0_23] : memref<10x18x4xf32, #tpu.memory_space<vmem>>, vector<8x16x4xf32>
    %14 = vector.shape_cast %13 : vector<8x16x4xf32> to vector<128x4xf32>
    %c0_24 = arith.constant 0 : index
    %c8_25 = arith.constant 8 : index
    %15 = vector.load %arg8[%c0_24, %c8_25] : memref<128x24xf32, #tpu.memory_space<vmem>>, vector<128x4xf32>
    tpu.vector_store %arg8[%c0_24, %c8_25], %14 {strides = array<i32>} : memref<128x24xf32, #tpu.memory_space<vmem>>, vector<128x4xf32>,
    %c1_26 = arith.constant 1 : index
    %c0_27 = arith.constant 0 : index
    %c0_28 = arith.constant 0 : index
    %16 = vector.load %arg7[%c1_26, %c0_27, %c0_28] : memref<10x18x4xf32, #tpu.memory_space<vmem>>, vector<8x16x4xf32>
    %17 = vector.shape_cast %16 : vector<8x16x4xf32> to vector<128x4xf32>
    %c0_29 = arith.constant 0 : index
    %c12 = arith.constant 12 : index
    %18 = vector.load %arg8[%c0_29, %c12] : memref<128x24xf32, #tpu.memory_space<vmem>>, vector<128x4xf32>
    tpu.vector_store %arg8[%c0_29, %c12], %17 {strides = array<i32>} : memref<128x24xf32, #tpu.memory_space<vmem>>, vector<128x4xf32>,
    %c1_30 = arith.constant 1 : index
    %c1_31 = arith.constant 1 : index
    %c0_32 = arith.constant 0 : index
    %19 = vector.load %arg7[%c1_30, %c1_31, %c0_32] : memref<10x18x4xf32, #tpu.memory_space<vmem>>, vector<8x16x4xf32>
    %20 = vector.shape_cast %19 : vector<8x16x4xf32> to vector<128x4xf32>
    %c0_33 = arith.constant 0 : index
    %c16 = arith.constant 16 : index
    %21 = vector.load %arg8[%c0_33, %c16] : memref<128x24xf32, #tpu.memory_space<vmem>>, vector<128x4xf32>
    tpu.vector_store %arg8[%c0_33, %c16], %20 {strides = array<i32>} : memref<128x24xf32, #tpu.memory_space<vmem>>, vector<128x4xf32>,
    %c1_34 = arith.constant 1 : index
    %c2_35 = arith.constant 2 : index
    %c0_36 = arith.constant 0 : index
    %22 = vector.load %arg7[%c1_34, %c2_35, %c0_36] : memref<10x18x4xf32, #tpu.memory_space<vmem>>, vector<8x16x4xf32>
    %23 = vector.shape_cast %22 : vector<8x16x4xf32> to vector<128x4xf32>
    %c0_37 = arith.constant 0 : index
    %c20 = arith.constant 20 : index
    %24 = vector.load %arg8[%c0_37, %c20] : memref<128x24xf32, #tpu.memory_space<vmem>>, vector<128x4xf32>
    tpu.vector_store %arg8[%c0_37, %c20], %23 {strides = array<i32>} : memref<128x24xf32, #tpu.memory_space<vmem>>, vector<128x4xf32>,
    %c0_38 = arith.constant 0 : index
    %c0_39 = arith.constant 0 : index
    %25 = vector.load %arg8[%c0_38, %c0_39] : memref<128x24xf32, #tpu.memory_space<vmem>>, vector<128x24xf32>
    %c0_40 = arith.constant 0 : index
    %c0_41 = arith.constant 0 : index
    %c0_42 = arith.constant 0 : index
    %26 = vector.load %arg4[%c0_40, %c0_41, %c0_42] : memref<2x24x8xf32, #tpu.memory_space<vmem>>, vector<1x24x8xf32>
    %27 = vector.shape_cast %26 : vector<1x24x8xf32> to vector<24x8xf32>
    %cst = arith.constant dense<0.000000e+00> : vector<128x8xf32>
    %28 = tpu.matmul %25, %27, %cst {dimension_numbers = #tpu.dot_dimension_numbers<[1], [0], [0], [1], [0, 0, 1, 1], [], []>} : vector<128x24xf32>, vector<24x8xf32>, vector<128x8xf32> -> vector<128x8xf32>
    %29 = vector.broadcast %6 : vector<1x8xf32> to vector<128x8xf32>
    %30 = arith.addf %28, %29 : vector<128x8xf32>
    %31 = vector.shape_cast %30 : vector<128x8xf32> to vector<8x16x8xf32>
    %32 = vector.extract_strided_slice %31 {offsets = [0, 0, 0], sizes = [8, 1, 8], strides = [1, 1, 1]} : vector<8x16x8xf32> to vector<8x1x8xf32>
    %33 = vector.shape_cast %32 : vector<8x1x8xf32> to vector<8x8xf32>
    %c0_43 = arith.constant 0 : index
    %c0_44 = arith.constant 0 : index
    %c0_45 = arith.constant 0 : index
    %34 = vector.load %arg6[%c0_43, %c0_44, %c0_45] : memref<1x8x256xf32, #tpu.memory_space<vmem>>, vector<1x8x8xf32>
    %35 = vector.shape_cast %34 : vector<1x8x8xf32> to vector<8x8xf32>
    %36 = vector.shape_cast %33 : vector<8x8xf32> to vector<1x8x8xf32>
    tpu.vector_store %arg6[%c0_43, %c0_44, %c0_45], %36 {strides = array<i32>} : memref<1x8x256xf32, #tpu.memory_space<vmem>>, vector<1x8x8xf32>,
    %37 = vector.extract_strided_slice %31 {offsets = [0, 1, 0], sizes = [8, 1, 8], strides = [1, 1, 1]} : vector<8x16x8xf32> to vector<8x1x8xf32>
    %38 = vector.shape_cast %37 : vector<8x1x8xf32> to vector<8x8xf32>
    %c0_46 = arith.constant 0 : index
    %c0_47 = arith.constant 0 : index
    %c8_48 = arith.constant 8 : index
    %39 = vector.load %arg6[%c0_46, %c0_47, %c8_48] : memref<1x8x256xf32, #tpu.memory_space<vmem>>, vector<1x8x8xf32>
    %40 = vector.shape_cast %39 : vector<1x8x8xf32> to vector<8x8xf32>
    %41 = vector.shape_cast %38 : vector<8x8xf32> to vector<1x8x8xf32>
    tpu.vector_store %arg6[%c0_46, %c0_47, %c8_48], %41 {strides = array<i32>} : memref<1x8x256xf32, #tpu.memory_space<vmem>>, vector<1x8x8xf32>,
    %42 = vector.extract_strided_slice %31 {offsets = [0, 2, 0], sizes = [8, 1, 8], strides = [1, 1, 1]} : vector<8x16x8xf32> to vector<8x1x8xf32>
    %43 = vector.shape_cast %42 : vector<8x1x8xf32> to vector<8x8xf32>
    %c0_49 = arith.constant 0 : index
    %c0_50 = arith.constant 0 : index
    %c16_51 = arith.constant 16 : index
    %44 = vector.load %arg6[%c0_49, %c0_50, %c16_51] : memref<1x8x256xf32, #tpu.memory_space<vmem>>, vector<1x8x8xf32>
    %45 = vector.shape_cast %44 : vector<1x8x8xf32> to vector<8x8xf32>
    %46 = vector.shape_cast %43 : vector<8x8xf32> to vector<1x8x8xf32>
    tpu.vector_store %arg6[%c0_49, %c0_50, %c16_51], %46 {strides = array<i32>} : memref<1x8x256xf32, #tpu.memory_space<vmem>>, vector<1x8x8xf32>,
    %47 = vector.extract_strided_slice %31 {offsets = [0, 3, 0], sizes = [8, 1, 8], strides = [1, 1, 1]} : vector<8x16x8xf32> to vector<8x1x8xf32>
    %48 = vector.shape_cast %47 : vector<8x1x8xf32> to vector<8x8xf32>
    %c0_52 = arith.constant 0 : index
    %c0_53 = arith.constant 0 : index
    %c24 = arith.constant 24 : index
    %49 = vector.load %arg6[%c0_52, %c0_53, %c24] : memref<1x8x256xf32, #tpu.memory_space<vmem>>, vector<1x8x8xf32>
    %50 = vector.shape_cast %49 : vector<1x8x8xf32> to vector<8x8xf32>
    %51 = vector.shape_cast %48 : vector<8x8xf32> to vector<1x8x8xf32>
    tpu.vector_store %arg6[%c0_52, %c0_53, %c24], %51 {strides = array<i32>} : memref<1x8x256xf32, #tpu.memory_space<vmem>>, vector<1x8x8xf32>,
    %52 = vector.extract_strided_slice %31 {offsets = [0, 4, 0], sizes = [8, 1, 8], strides = [1, 1, 1]} : vector<8x16x8xf32> to vector<8x1x8xf32>
    %53 = vector.shape_cast %52 : vector<8x1x8xf32> to vector<8x8xf32>
    %c0_54 = arith.constant 0 : index
    %c0_55 = arith.constant 0 : index
    %c32 = arith.constant 32 : index
    %54 = vector.load %arg6[%c0_54, %c0_55, %c32] : memref<1x8x256xf32, #tpu.memory_space<vmem>>, vector<1x8x8xf32>
    %55 = vector.shape_cast %54 : vector<1x8x8xf32> to vector<8x8xf32>
    %56 = vector.shape_cast %53 : vector<8x8xf32> to vector<1x8x8xf32>
    tpu.vector_store %arg6[%c0_54, %c0_55, %c32], %56 {strides = array<i32>} : memref<1x8x256xf32, #tpu.memory_space<vmem>>, vector<1x8x8xf32>,
    %57 = vector.extract_strided_slice %31 {offsets = [0, 5, 0], sizes = [8, 1, 8], strides = [1, 1, 1]} : vector<8x16x8xf32> to vector<8x1x8xf32>
    %58 = vector.shape_cast %57 : vector<8x1x8xf32> to vector<8x8xf32>
    %c0_56 = arith.constant 0 : index
    %c0_57 = arith.constant 0 : index
    %c40 = arith.constant 40 : index
    %59 = vector.load %arg6[%c0_56, %c0_57, %c40] : memref<1x8x256xf32, #tpu.memory_space<vmem>>, vector<1x8x8xf32>
    %60 = vector.shape_cast %59 : vector<1x8x8xf32> to vector<8x8xf32>
    %61 = vector.shape_cast %58 : vector<8x8xf32> to vector<1x8x8xf32>
    tpu.vector_store %arg6[%c0_56, %c0_57, %c40], %61 {strides = array<i32>} : memref<1x8x256xf32, #tpu.memory_space<vmem>>, vector<1x8x8xf32>,
    %62 = vector.extract_strided_slice %31 {offsets = [0, 6, 0], sizes = [8, 1, 8], strides = [1, 1, 1]} : vector<8x16x8xf32> to vector<8x1x8xf32>
    %63 = vector.shape_cast %62 : vector<8x1x8xf32> to vector<8x8xf32>
    %c0_58 = arith.constant 0 : index
    %c0_59 = arith.constant 0 : index
    %c48 = arith.constant 48 : index
    %64 = vector.load %arg6[%c0_58, %c0_59, %c48] : memref<1x8x256xf32, #tpu.memory_space<vmem>>, vector<1x8x8xf32>
    %65 = vector.shape_cast %64 : vector<1x8x8xf32> to vector<8x8xf32>
    %66 = vector.shape_cast %63 : vector<8x8xf32> to vector<1x8x8xf32>
    tpu.vector_store %arg6[%c0_58, %c0_59, %c48], %66 {strides = array<i32>} : memref<1x8x256xf32, #tpu.memory_space<vmem>>, vector<1x8x8xf32>,
    %67 = vector.extract_strided_slice %31 {offsets = [0, 7, 0], sizes = [8, 1, 8], strides = [1, 1, 1]} : vector<8x16x8xf32> to vector<8x1x8xf32>
    %68 = vector.shape_cast %67 : vector<8x1x8xf32> to vector<8x8xf32>
    %c0_60 = arith.constant 0 : index
    %c0_61 = arith.constant 0 : index
    %c56 = arith.constant 56 : index
    %69 = vector.load %arg6[%c0_60, %c0_61, %c56] : memref<1x8x256xf32, #tpu.memory_space<vmem>>, vector<1x8x8xf32>
    %70 = vector.shape_cast %69 : vector<1x8x8xf32> to vector<8x8xf32>
    %71 = vector.shape_cast %68 : vector<8x8xf32> to vector<1x8x8xf32>
    tpu.vector_store %arg6[%c0_60, %c0_61, %c56], %71 {strides = array<i32>} : memref<1x8x256xf32, #tpu.memory_space<vmem>>, vector<1x8x8xf32>,
    %72 = vector.extract_strided_slice %31 {offsets = [0, 8, 0], sizes = [8, 1, 8], strides = [1, 1, 1]} : vector<8x16x8xf32> to vector<8x1x8xf32>
    %73 = vector.shape_cast %72 : vector<8x1x8xf32> to vector<8x8xf32>
    %c0_62 = arith.constant 0 : index
    %c0_63 = arith.constant 0 : index
    %c64 = arith.constant 64 : index
    %74 = vector.load %arg6[%c0_62, %c0_63, %c64] : memref<1x8x256xf32, #tpu.memory_space<vmem>>, vector<1x8x8xf32>
    %75 = vector.shape_cast %74 : vector<1x8x8xf32> to vector<8x8xf32>
    %76 = vector.shape_cast %73 : vector<8x8xf32> to vector<1x8x8xf32>
    tpu.vector_store %arg6[%c0_62, %c0_63, %c64], %76 {strides = array<i32>} : memref<1x8x256xf32, #tpu.memory_space<vmem>>, vector<1x8x8xf32>,
    %77 = vector.extract_strided_slice %31 {offsets = [0, 9, 0], sizes = [8, 1, 8], strides = [1, 1, 1]} : vector<8x16x8xf32> to vector<8x1x8xf32>
    %78 = vector.shape_cast %77 : vector<8x1x8xf32> to vector<8x8xf32>
    %c0_64 = arith.constant 0 : index
    %c0_65 = arith.constant 0 : index
    %c72 = arith.constant 72 : index
    %79 = vector.load %arg6[%c0_64, %c0_65, %c72] : memref<1x8x256xf32, #tpu.memory_space<vmem>>, vector<1x8x8xf32>
    %80 = vector.shape_cast %79 : vector<1x8x8xf32> to vector<8x8xf32>
    %81 = vector.shape_cast %78 : vector<8x8xf32> to vector<1x8x8xf32>
    tpu.vector_store %arg6[%c0_64, %c0_65, %c72], %81 {strides = array<i32>} : memref<1x8x256xf32, #tpu.memory_space<vmem>>, vector<1x8x8xf32>,
    %82 = vector.extract_strided_slice %31 {offsets = [0, 10, 0], sizes = [8, 1, 8], strides = [1, 1, 1]} : vector<8x16x8xf32> to vector<8x1x8xf32>
    %83 = vector.shape_cast %82 : vector<8x1x8xf32> to vector<8x8xf32>
    %c0_66 = arith.constant 0 : index
    %c0_67 = arith.constant 0 : index
    %c80 = arith.constant 80 : index
    %84 = vector.load %arg6[%c0_66, %c0_67, %c80] : memref<1x8x256xf32, #tpu.memory_space<vmem>>, vector<1x8x8xf32>
    %85 = vector.shape_cast %84 : vector<1x8x8xf32> to vector<8x8xf32>
    %86 = vector.shape_cast %83 : vector<8x8xf32> to vector<1x8x8xf32>
    tpu.vector_store %arg6[%c0_66, %c0_67, %c80], %86 {strides = array<i32>} : memref<1x8x256xf32, #tpu.memory_space<vmem>>, vector<1x8x8xf32>,
    %87 = vector.extract_strided_slice %31 {offsets = [0, 11, 0], sizes = [8, 1, 8], strides = [1, 1, 1]} : vector<8x16x8xf32> to vector<8x1x8xf32>
    %88 = vector.shape_cast %87 : vector<8x1x8xf32> to vector<8x8xf32>
    %c0_68 = arith.constant 0 : index
    %c0_69 = arith.constant 0 : index
    %c88 = arith.constant 88 : index
    %89 = vector.load %arg6[%c0_68, %c0_69, %c88] : memref<1x8x256xf32, #tpu.memory_space<vmem>>, vector<1x8x8xf32>
    %90 = vector.shape_cast %89 : vector<1x8x8xf32> to vector<8x8xf32>
    %91 = vector.shape_cast %88 : vector<8x8xf32> to vector<1x8x8xf32>
    tpu.vector_store %arg6[%c0_68, %c0_69, %c88], %91 {strides = array<i32>} : memref<1x8x256xf32, #tpu.memory_space<vmem>>, vector<1x8x8xf32>,
    %92 = vector.extract_strided_slice %31 {offsets = [0, 12, 0], sizes = [8, 1, 8], strides = [1, 1, 1]} : vector<8x16x8xf32> to vector<8x1x8xf32>
    %93 = vector.shape_cast %92 : vector<8x1x8xf32> to vector<8x8xf32>
    %c0_70 = arith.constant 0 : index
    %c0_71 = arith.constant 0 : index
    %c96 = arith.constant 96 : index
    %94 = vector.load %arg6[%c0_70, %c0_71, %c96] : memref<1x8x256xf32, #tpu.memory_space<vmem>>, vector<1x8x8xf32>
    %95 = vector.shape_cast %94 : vector<1x8x8xf32> to vector<8x8xf32>
    %96 = vector.shape_cast %93 : vector<8x8xf32> to vector<1x8x8xf32>
    tpu.vector_store %arg6[%c0_70, %c0_71, %c96], %96 {strides = array<i32>} : memref<1x8x256xf32, #tpu.memory_space<vmem>>, vector<1x8x8xf32>,
    %97 = vector.extract_strided_slice %31 {offsets = [0, 13, 0], sizes = [8, 1, 8], strides = [1, 1, 1]} : vector<8x16x8xf32> to vector<8x1x8xf32>
    %98 = vector.shape_cast %97 : vector<8x1x8xf32> to vector<8x8xf32>
    %c0_72 = arith.constant 0 : index
    %c0_73 = arith.constant 0 : index
    %c104 = arith.constant 104 : index
    %99 = vector.load %arg6[%c0_72, %c0_73, %c104] : memref<1x8x256xf32, #tpu.memory_space<vmem>>, vector<1x8x8xf32>
    %100 = vector.shape_cast %99 : vector<1x8x8xf32> to vector<8x8xf32>
    %101 = vector.shape_cast %98 : vector<8x8xf32> to vector<1x8x8xf32>
    tpu.vector_store %arg6[%c0_72, %c0_73, %c104], %101 {strides = array<i32>} : memref<1x8x256xf32, #tpu.memory_space<vmem>>, vector<1x8x8xf32>,
    %102 = vector.extract_strided_slice %31 {offsets = [0, 14, 0], sizes = [8, 1, 8], strides = [1, 1, 1]} : vector<8x16x8xf32> to vector<8x1x8xf32>
    %103 = vector.shape_cast %102 : vector<8x1x8xf32> to vector<8x8xf32>
    %c0_74 = arith.constant 0 : index
    %c0_75 = arith.constant 0 : index
    %c112 = arith.constant 112 : index
    %104 = vector.load %arg6[%c0_74, %c0_75, %c112] : memref<1x8x256xf32, #tpu.memory_space<vmem>>, vector<1x8x8xf32>
    %105 = vector.shape_cast %104 : vector<1x8x8xf32> to vector<8x8xf32>
    %106 = vector.shape_cast %103 : vector<8x8xf32> to vector<1x8x8xf32>
    tpu.vector_store %arg6[%c0_74, %c0_75, %c112], %106 {strides = array<i32>} : memref<1x8x256xf32, #tpu.memory_space<vmem>>, vector<1x8x8xf32>,
    %107 = vector.extract_strided_slice %31 {offsets = [0, 15, 0], sizes = [8, 1, 8], strides = [1, 1, 1]} : vector<8x16x8xf32> to vector<8x1x8xf32>
    %108 = vector.shape_cast %107 : vector<8x1x8xf32> to vector<8x8xf32>
    %c0_76 = arith.constant 0 : index
    %c0_77 = arith.constant 0 : index
    %c120 = arith.constant 120 : index
    %109 = vector.load %arg6[%c0_76, %c0_77, %c120] : memref<1x8x256xf32, #tpu.memory_space<vmem>>, vector<1x8x8xf32>
    %110 = vector.shape_cast %109 : vector<1x8x8xf32> to vector<8x8xf32>
    %111 = vector.shape_cast %108 : vector<8x8xf32> to vector<1x8x8xf32>
    tpu.vector_store %arg6[%c0_76, %c0_77, %c120], %111 {strides = array<i32>} : memref<1x8x256xf32, #tpu.memory_space<vmem>>, vector<1x8x8xf32>,
    %c1_78 = arith.constant 1 : index
    %c0_79 = arith.constant 0 : index
    %c0_80 = arith.constant 0 : index
    %112 = vector.load %arg7[%c1_78, %c0_79, %c0_80] : memref<10x18x4xf32, #tpu.memory_space<vmem>>, vector<8x16x4xf32>
    %113 = vector.shape_cast %112 : vector<8x16x4xf32> to vector<128x4xf32>
    %c0_81 = arith.constant 0 : index
    %c0_82 = arith.constant 0 : index
    %114 = vector.load %arg8[%c0_81, %c0_82] : memref<128x24xf32, #tpu.memory_space<vmem>>, vector<128x4xf32>
    tpu.vector_store %arg8[%c0_81, %c0_82], %113 {strides = array<i32>} : memref<128x24xf32, #tpu.memory_space<vmem>>, vector<128x4xf32>,
    %c1_83 = arith.constant 1 : index
    %c1_84 = arith.constant 1 : index
    %c0_85 = arith.constant 0 : index
    %115 = vector.load %arg7[%c1_83, %c1_84, %c0_85] : memref<10x18x4xf32, #tpu.memory_space<vmem>>, vector<8x16x4xf32>
    %116 = vector.shape_cast %115 : vector<8x16x4xf32> to vector<128x4xf32>
    %c0_86 = arith.constant 0 : index
    %c4_87 = arith.constant 4 : index
    %117 = vector.load %arg8[%c0_86, %c4_87] : memref<128x24xf32, #tpu.memory_space<vmem>>, vector<128x4xf32>
    tpu.vector_store %arg8[%c0_86, %c4_87], %116 {strides = array<i32>} : memref<128x24xf32, #tpu.memory_space<vmem>>, vector<128x4xf32>,
    %c1_88 = arith.constant 1 : index
    %c2_89 = arith.constant 2 : index
    %c0_90 = arith.constant 0 : index
    %118 = vector.load %arg7[%c1_88, %c2_89, %c0_90] : memref<10x18x4xf32, #tpu.memory_space<vmem>>, vector<8x16x4xf32>
    %119 = vector.shape_cast %118 : vector<8x16x4xf32> to vector<128x4xf32>
    %c0_91 = arith.constant 0 : index
    %c8_92 = arith.constant 8 : index
    %120 = vector.load %arg8[%c0_91, %c8_92] : memref<128x24xf32, #tpu.memory_space<vmem>>, vector<128x4xf32>
    tpu.vector_store %arg8[%c0_91, %c8_92], %119 {strides = array<i32>} : memref<128x24xf32, #tpu.memory_space<vmem>>, vector<128x4xf32>,
    %c2_93 = arith.constant 2 : index
    %c0_94 = arith.constant 0 : index
    %c0_95 = arith.constant 0 : index
    %121 = vector.load %arg7[%c2_93, %c0_94, %c0_95] : memref<10x18x4xf32, #tpu.memory_space<vmem>>, vector<8x16x4xf32>
    %122 = vector.shape_cast %121 : vector<8x16x4xf32> to vector<128x4xf32>
    %c0_96 = arith.constant 0 : index
    %c12_97 = arith.constant 12 : index
    %123 = vector.load %arg8[%c0_96, %c12_97] : memref<128x24xf32, #tpu.memory_space<vmem>>, vector<128x4xf32>
    tpu.vector_store %arg8[%c0_96, %c12_97], %122 {strides = array<i32>} : memref<128x24xf32, #tpu.memory_space<vmem>>, vector<128x4xf32>,
    %c2_98 = arith.constant 2 : index
    %c1_99 = arith.constant 1 : index
    %c0_100 = arith.constant 0 : index
    %124 = vector.load %arg7[%c2_98, %c1_99, %c0_100] : memref<10x18x4xf32, #tpu.memory_space<vmem>>, vector<8x16x4xf32>
    %125 = vector.shape_cast %124 : vector<8x16x4xf32> to vector<128x4xf32>
    %c0_101 = arith.constant 0 : index
    %c16_102 = arith.constant 16 : index
    %126 = vector.load %arg8[%c0_101, %c16_102] : memref<128x24xf32, #tpu.memory_space<vmem>>, vector<128x4xf32>
    tpu.vector_store %arg8[%c0_101, %c16_102], %125 {strides = array<i32>} : memref<128x24xf32, #tpu.memory_space<vmem>>, vector<128x4xf32>,
    %c2_103 = arith.constant 2 : index
    %c2_104 = arith.constant 2 : index
    %c0_105 = arith.constant 0 : index
    %127 = vector.load %arg7[%c2_103, %c2_104, %c0_105] : memref<10x18x4xf32, #tpu.memory_space<vmem>>, vector<8x16x4xf32>
    %128 = vector.shape_cast %127 : vector<8x16x4xf32> to vector<128x4xf32>
    %c0_106 = arith.constant 0 : index
    %c20_107 = arith.constant 20 : index
    %129 = vector.load %arg8[%c0_106, %c20_107] : memref<128x24xf32, #tpu.memory_space<vmem>>, vector<128x4xf32>
    tpu.vector_store %arg8[%c0_106, %c20_107], %128 {strides = array<i32>} : memref<128x24xf32, #tpu.memory_space<vmem>>, vector<128x4xf32>,
    %c0_108 = arith.constant 0 : index
    %c0_109 = arith.constant 0 : index
    %130 = vector.load %arg8[%c0_108, %c0_109] : memref<128x24xf32, #tpu.memory_space<vmem>>, vector<128x24xf32>
    %c1_110 = arith.constant 1 : index
    %c0_111 = arith.constant 0 : index
    %c0_112 = arith.constant 0 : index
    %131 = vector.load %arg4[%c1_110, %c0_111, %c0_112] : memref<2x24x8xf32, #tpu.memory_space<vmem>>, vector<1x24x8xf32>
    %132 = vector.shape_cast %131 : vector<1x24x8xf32> to vector<24x8xf32>
    %cst_113 = arith.constant dense<0.000000e+00> : vector<128x8xf32>
    %133 = tpu.matmul %130, %132, %cst_113 {dimension_numbers = #tpu.dot_dimension_numbers<[1], [0], [0], [1], [0, 0, 1, 1], [], []>} : vector<128x24xf32>, vector<24x8xf32>, vector<128x8xf32> -> vector<128x8xf32>
    %134 = vector.broadcast %6 : vector<1x8xf32> to vector<128x8xf32>
    %135 = arith.addf %133, %134 : vector<128x8xf32>
    %136 = vector.shape_cast %135 : vector<128x8xf32> to vector<8x16x8xf32>
    %137 = vector.extract_strided_slice %136 {offsets = [0, 0, 0], sizes = [8, 1, 8], strides = [1, 1, 1]} : vector<8x16x8xf32> to vector<8x1x8xf32>
    %138 = vector.shape_cast %137 : vector<8x1x8xf32> to vector<8x8xf32>
    %c0_114 = arith.constant 0 : index
    %c0_115 = arith.constant 0 : index
    %c128 = arith.constant 128 : index
    %139 = vector.load %arg6[%c0_114, %c0_115, %c128] : memref<1x8x256xf32, #tpu.memory_space<vmem>>, vector<1x8x8xf32>
    %140 = vector.shape_cast %139 : vector<1x8x8xf32> to vector<8x8xf32>
    %141 = vector.shape_cast %138 : vector<8x8xf32> to vector<1x8x8xf32>
    tpu.vector_store %arg6[%c0_114, %c0_115, %c128], %141 {strides = array<i32>} : memref<1x8x256xf32, #tpu.memory_space<vmem>>, vector<1x8x8xf32>,
    %142 = vector.extract_strided_slice %136 {offsets = [0, 1, 0], sizes = [8, 1, 8], strides = [1, 1, 1]} : vector<8x16x8xf32> to vector<8x1x8xf32>
    %143 = vector.shape_cast %142 : vector<8x1x8xf32> to vector<8x8xf32>
    %c0_116 = arith.constant 0 : index
    %c0_117 = arith.constant 0 : index
    %c136 = arith.constant 136 : index
    %144 = vector.load %arg6[%c0_116, %c0_117, %c136] : memref<1x8x256xf32, #tpu.memory_space<vmem>>, vector<1x8x8xf32>
    %145 = vector.shape_cast %144 : vector<1x8x8xf32> to vector<8x8xf32>
    %146 = vector.shape_cast %143 : vector<8x8xf32> to vector<1x8x8xf32>
    tpu.vector_store %arg6[%c0_116, %c0_117, %c136], %146 {strides = array<i32>} : memref<1x8x256xf32, #tpu.memory_space<vmem>>, vector<1x8x8xf32>,
    %147 = vector.extract_strided_slice %136 {offsets = [0, 2, 0], sizes = [8, 1, 8], strides = [1, 1, 1]} : vector<8x16x8xf32> to vector<8x1x8xf32>
    %148 = vector.shape_cast %147 : vector<8x1x8xf32> to vector<8x8xf32>
    %c0_118 = arith.constant 0 : index
    %c0_119 = arith.constant 0 : index
    %c144 = arith.constant 144 : index
    %149 = vector.load %arg6[%c0_118, %c0_119, %c144] : memref<1x8x256xf32, #tpu.memory_space<vmem>>, vector<1x8x8xf32>
    %150 = vector.shape_cast %149 : vector<1x8x8xf32> to vector<8x8xf32>
    %151 = vector.shape_cast %148 : vector<8x8xf32> to vector<1x8x8xf32>
    tpu.vector_store %arg6[%c0_118, %c0_119, %c144], %151 {strides = array<i32>} : memref<1x8x256xf32, #tpu.memory_space<vmem>>, vector<1x8x8xf32>,
    %152 = vector.extract_strided_slice %136 {offsets = [0, 3, 0], sizes = [8, 1, 8], strides = [1, 1, 1]} : vector<8x16x8xf32> to vector<8x1x8xf32>
    %153 = vector.shape_cast %152 : vector<8x1x8xf32> to vector<8x8xf32>
    %c0_120 = arith.constant 0 : index
    %c0_121 = arith.constant 0 : index
    %c152 = arith.constant 152 : index
    %154 = vector.load %arg6[%c0_120, %c0_121, %c152] : memref<1x8x256xf32, #tpu.memory_space<vmem>>, vector<1x8x8xf32>
    %155 = vector.shape_cast %154 : vector<1x8x8xf32> to vector<8x8xf32>
    %156 = vector.shape_cast %153 : vector<8x8xf32> to vector<1x8x8xf32>
    tpu.vector_store %arg6[%c0_120, %c0_121, %c152], %156 {strides = array<i32>} : memref<1x8x256xf32, #tpu.memory_space<vmem>>, vector<1x8x8xf32>,
    %157 = vector.extract_strided_slice %136 {offsets = [0, 4, 0], sizes = [8, 1, 8], strides = [1, 1, 1]} : vector<8x16x8xf32> to vector<8x1x8xf32>
    %158 = vector.shape_cast %157 : vector<8x1x8xf32> to vector<8x8xf32>
    %c0_122 = arith.constant 0 : index
    %c0_123 = arith.constant 0 : index
    %c160 = arith.constant 160 : index
    %159 = vector.load %arg6[%c0_122, %c0_123, %c160] : memref<1x8x256xf32, #tpu.memory_space<vmem>>, vector<1x8x8xf32>
    %160 = vector.shape_cast %159 : vector<1x8x8xf32> to vector<8x8xf32>
    %161 = vector.shape_cast %158 : vector<8x8xf32> to vector<1x8x8xf32>
    tpu.vector_store %arg6[%c0_122, %c0_123, %c160], %161 {strides = array<i32>} : memref<1x8x256xf32, #tpu.memory_space<vmem>>, vector<1x8x8xf32>,
    %162 = vector.extract_strided_slice %136 {offsets = [0, 5, 0], sizes = [8, 1, 8], strides = [1, 1, 1]} : vector<8x16x8xf32> to vector<8x1x8xf32>
    %163 = vector.shape_cast %162 : vector<8x1x8xf32> to vector<8x8xf32>
    %c0_124 = arith.constant 0 : index
    %c0_125 = arith.constant 0 : index
    %c168 = arith.constant 168 : index
    %164 = vector.load %arg6[%c0_124, %c0_125, %c168] : memref<1x8x256xf32, #tpu.memory_space<vmem>>, vector<1x8x8xf32>
    %165 = vector.shape_cast %164 : vector<1x8x8xf32> to vector<8x8xf32>
    %166 = vector.shape_cast %163 : vector<8x8xf32> to vector<1x8x8xf32>
    tpu.vector_store %arg6[%c0_124, %c0_125, %c168], %166 {strides = array<i32>} : memref<1x8x256xf32, #tpu.memory_space<vmem>>, vector<1x8x8xf32>,
    %167 = vector.extract_strided_slice %136 {offsets = [0, 6, 0], sizes = [8, 1, 8], strides = [1, 1, 1]} : vector<8x16x8xf32> to vector<8x1x8xf32>
    %168 = vector.shape_cast %167 : vector<8x1x8xf32> to vector<8x8xf32>
    %c0_126 = arith.constant 0 : index
    %c0_127 = arith.constant 0 : index
    %c176 = arith.constant 176 : index
    %169 = vector.load %arg6[%c0_126, %c0_127, %c176] : memref<1x8x256xf32, #tpu.memory_space<vmem>>, vector<1x8x8xf32>
    %170 = vector.shape_cast %169 : vector<1x8x8xf32> to vector<8x8xf32>
    %171 = vector.shape_cast %168 : vector<8x8xf32> to vector<1x8x8xf32>
    tpu.vector_store %arg6[%c0_126, %c0_127, %c176], %171 {strides = array<i32>} : memref<1x8x256xf32, #tpu.memory_space<vmem>>, vector<1x8x8xf32>,
    %172 = vector.extract_strided_slice %136 {offsets = [0, 7, 0], sizes = [8, 1, 8], strides = [1, 1, 1]} : vector<8x16x8xf32> to vector<8x1x8xf32>
    %173 = vector.shape_cast %172 : vector<8x1x8xf32> to vector<8x8xf32>
    %c0_128 = arith.constant 0 : index
    %c0_129 = arith.constant 0 : index
    %c184 = arith.constant 184 : index
    %174 = vector.load %arg6[%c0_128, %c0_129, %c184] : memref<1x8x256xf32, #tpu.memory_space<vmem>>, vector<1x8x8xf32>
    %175 = vector.shape_cast %174 : vector<1x8x8xf32> to vector<8x8xf32>
    %176 = vector.shape_cast %173 : vector<8x8xf32> to vector<1x8x8xf32>
    tpu.vector_store %arg6[%c0_128, %c0_129, %c184], %176 {strides = array<i32>} : memref<1x8x256xf32, #tpu.memory_space<vmem>>, vector<1x8x8xf32>,
    %177 = vector.extract_strided_slice %136 {offsets = [0, 8, 0], sizes = [8, 1, 8], strides = [1, 1, 1]} : vector<8x16x8xf32> to vector<8x1x8xf32>
    %178 = vector.shape_cast %177 : vector<8x1x8xf32> to vector<8x8xf32>
    %c0_130 = arith.constant 0 : index
    %c0_131 = arith.constant 0 : index
    %c192 = arith.constant 192 : index
    %179 = vector.load %arg6[%c0_130, %c0_131, %c192] : memref<1x8x256xf32, #tpu.memory_space<vmem>>, vector<1x8x8xf32>
    %180 = vector.shape_cast %179 : vector<1x8x8xf32> to vector<8x8xf32>
    %181 = vector.shape_cast %178 : vector<8x8xf32> to vector<1x8x8xf32>
    tpu.vector_store %arg6[%c0_130, %c0_131, %c192], %181 {strides = array<i32>} : memref<1x8x256xf32, #tpu.memory_space<vmem>>, vector<1x8x8xf32>,
    %182 = vector.extract_strided_slice %136 {offsets = [0, 9, 0], sizes = [8, 1, 8], strides = [1, 1, 1]} : vector<8x16x8xf32> to vector<8x1x8xf32>
    %183 = vector.shape_cast %182 : vector<8x1x8xf32> to vector<8x8xf32>
    %c0_132 = arith.constant 0 : index
    %c0_133 = arith.constant 0 : index
    %c200 = arith.constant 200 : index
    %184 = vector.load %arg6[%c0_132, %c0_133, %c200] : memref<1x8x256xf32, #tpu.memory_space<vmem>>, vector<1x8x8xf32>
    %185 = vector.shape_cast %184 : vector<1x8x8xf32> to vector<8x8xf32>
    %186 = vector.shape_cast %183 : vector<8x8xf32> to vector<1x8x8xf32>
    tpu.vector_store %arg6[%c0_132, %c0_133, %c200], %186 {strides = array<i32>} : memref<1x8x256xf32, #tpu.memory_space<vmem>>, vector<1x8x8xf32>,
    %187 = vector.extract_strided_slice %136 {offsets = [0, 10, 0], sizes = [8, 1, 8], strides = [1, 1, 1]} : vector<8x16x8xf32> to vector<8x1x8xf32>
    %188 = vector.shape_cast %187 : vector<8x1x8xf32> to vector<8x8xf32>
    %c0_134 = arith.constant 0 : index
    %c0_135 = arith.constant 0 : index
    %c208 = arith.constant 208 : index
    %189 = vector.load %arg6[%c0_134, %c0_135, %c208] : memref<1x8x256xf32, #tpu.memory_space<vmem>>, vector<1x8x8xf32>
    %190 = vector.shape_cast %189 : vector<1x8x8xf32> to vector<8x8xf32>
    %191 = vector.shape_cast %188 : vector<8x8xf32> to vector<1x8x8xf32>
    tpu.vector_store %arg6[%c0_134, %c0_135, %c208], %191 {strides = array<i32>} : memref<1x8x256xf32, #tpu.memory_space<vmem>>, vector<1x8x8xf32>,
    %192 = vector.extract_strided_slice %136 {offsets = [0, 11, 0], sizes = [8, 1, 8], strides = [1, 1, 1]} : vector<8x16x8xf32> to vector<8x1x8xf32>
    %193 = vector.shape_cast %192 : vector<8x1x8xf32> to vector<8x8xf32>
    %c0_136 = arith.constant 0 : index
    %c0_137 = arith.constant 0 : index
    %c216 = arith.constant 216 : index
    %194 = vector.load %arg6[%c0_136, %c0_137, %c216] : memref<1x8x256xf32, #tpu.memory_space<vmem>>, vector<1x8x8xf32>
    %195 = vector.shape_cast %194 : vector<1x8x8xf32> to vector<8x8xf32>
    %196 = vector.shape_cast %193 : vector<8x8xf32> to vector<1x8x8xf32>
    tpu.vector_store %arg6[%c0_136, %c0_137, %c216], %196 {strides = array<i32>} : memref<1x8x256xf32, #tpu.memory_space<vmem>>, vector<1x8x8xf32>,
    %197 = vector.extract_strided_slice %136 {offsets = [0, 12, 0], sizes = [8, 1, 8], strides = [1, 1, 1]} : vector<8x16x8xf32> to vector<8x1x8xf32>
    %198 = vector.shape_cast %197 : vector<8x1x8xf32> to vector<8x8xf32>
    %c0_138 = arith.constant 0 : index
    %c0_139 = arith.constant 0 : index
    %c224 = arith.constant 224 : index
    %199 = vector.load %arg6[%c0_138, %c0_139, %c224] : memref<1x8x256xf32, #tpu.memory_space<vmem>>, vector<1x8x8xf32>
    %200 = vector.shape_cast %199 : vector<1x8x8xf32> to vector<8x8xf32>
    %201 = vector.shape_cast %198 : vector<8x8xf32> to vector<1x8x8xf32>
    tpu.vector_store %arg6[%c0_138, %c0_139, %c224], %201 {strides = array<i32>} : memref<1x8x256xf32, #tpu.memory_space<vmem>>, vector<1x8x8xf32>,
    %202 = vector.extract_strided_slice %136 {offsets = [0, 13, 0], sizes = [8, 1, 8], strides = [1, 1, 1]} : vector<8x16x8xf32> to vector<8x1x8xf32>
    %203 = vector.shape_cast %202 : vector<8x1x8xf32> to vector<8x8xf32>
    %c0_140 = arith.constant 0 : index
    %c0_141 = arith.constant 0 : index
    %c232 = arith.constant 232 : index
    %204 = vector.load %arg6[%c0_140, %c0_141, %c232] : memref<1x8x256xf32, #tpu.memory_space<vmem>>, vector<1x8x8xf32>
    %205 = vector.shape_cast %204 : vector<1x8x8xf32> to vector<8x8xf32>
    %206 = vector.shape_cast %203 : vector<8x8xf32> to vector<1x8x8xf32>
    tpu.vector_store %arg6[%c0_140, %c0_141, %c232], %206 {strides = array<i32>} : memref<1x8x256xf32, #tpu.memory_space<vmem>>, vector<1x8x8xf32>,
    %207 = vector.extract_strided_slice %136 {offsets = [0, 14, 0], sizes = [8, 1, 8], strides = [1, 1, 1]} : vector<8x16x8xf32> to vector<8x1x8xf32>
    %208 = vector.shape_cast %207 : vector<8x1x8xf32> to vector<8x8xf32>
    %c0_142 = arith.constant 0 : index
    %c0_143 = arith.constant 0 : index
    %c240 = arith.constant 240 : index
    %209 = vector.load %arg6[%c0_142, %c0_143, %c240] : memref<1x8x256xf32, #tpu.memory_space<vmem>>, vector<1x8x8xf32>
    %210 = vector.shape_cast %209 : vector<1x8x8xf32> to vector<8x8xf32>
    %211 = vector.shape_cast %208 : vector<8x8xf32> to vector<1x8x8xf32>
    tpu.vector_store %arg6[%c0_142, %c0_143, %c240], %211 {strides = array<i32>} : memref<1x8x256xf32, #tpu.memory_space<vmem>>, vector<1x8x8xf32>,
    %212 = vector.extract_strided_slice %136 {offsets = [0, 15, 0], sizes = [8, 1, 8], strides = [1, 1, 1]} : vector<8x16x8xf32> to vector<8x1x8xf32>
    %213 = vector.shape_cast %212 : vector<8x1x8xf32> to vector<8x8xf32>
    %c0_144 = arith.constant 0 : index
    %c0_145 = arith.constant 0 : index
    %c248 = arith.constant 248 : index
    %214 = vector.load %arg6[%c0_144, %c0_145, %c248] : memref<1x8x256xf32, #tpu.memory_space<vmem>>, vector<1x8x8xf32>
    %215 = vector.shape_cast %214 : vector<1x8x8xf32> to vector<8x8xf32>
    %216 = vector.shape_cast %213 : vector<8x8xf32> to vector<1x8x8xf32>
    tpu.vector_store %arg6[%c0_144, %c0_145, %c248], %216 {strides = array<i32>} : memref<1x8x256xf32, #tpu.memory_space<vmem>>, vector<1x8x8xf32>,
    return
  }
  func.func @transform_0(%arg0: i32, %arg1: i32) -> (i32, i32, i32, i32) {
    %c0_i32 = arith.constant 0 : i32
    %c0_i32_0 = arith.constant 0 : i32
    %c0_i32_1 = arith.constant 0 : i32
    return %arg0, %arg1, %c0_i32, %c0_i32_0 : i32, i32, i32, i32
  }
  func.func @transform_1(%arg0: i32, %arg1: i32) -> (i32, i32, i32, i32) {
    %c1_i32 = arith.constant 1 : i32
    %0 = arith.addi %arg1, %c1_i32 : i32
    %c4_i32 = arith.constant 4 : i32
    %1 = arith.muli %0, %c4_i32 : i32
    %c0_i32 = arith.constant 0 : i32
    %c0_i32_0 = arith.constant 0 : i32
    %c0_i32_1 = arith.constant 0 : i32
    return %arg0, %1, %c0_i32, %c0_i32_0 : i32, i32, i32, i32
  }
  func.func @transform_2(%arg0: i32, %arg1: i32) -> (i32, i32, i32) {
    %c0_i32 = arith.constant 0 : i32
    %c0_i32_0 = arith.constant 0 : i32
    %c0_i32_1 = arith.constant 0 : i32
    %c0_i32_2 = arith.constant 0 : i32
    return %c0_i32, %c0_i32_0, %c0_i32_1 : i32, i32, i32
  }
  func.func @transform_3(%arg0: i32, %arg1: i32) -> (i32, i32) {
    %c0_i32 = arith.constant 0 : i32
    %c0_i32_0 = arith.constant 0 : i32
    %c0_i32_1 = arith.constant 0 : i32
    return %c0_i32, %c0_i32_0 : i32, i32
  }
  func.func @transform_4(%arg0: i32, %arg1: i32) -> (i32, i32, i32) {
    %c0_i32 = arith.constant 0 : i32
    %c0_i32_0 = arith.constant 0 : i32
    return %arg0, %arg1, %c0_i32 : i32, i32, i32
  }
}

</mosaic_0001>

<llo_original>
// kernel: tpu_custom_call.1
$region0: #{tpu_custom_call.1}
  #allocation0 [shape = 'u32[]', space=smem, size = 0x4, offset = 0x4, fixed_abs, tag = 'smem constant byte address 0x4 - core index']
  #allocation1 [shape = 'u32[144,128]{1,0:T(1,128)}', space=vmem, size = 0x12000, scoped, tag = 'internal scratch']
  #allocation2 [shape = 'f32[10,18,4]{2,1,0:T(8,128)}', space=vmem, size = 0x1e000, scoped, tag = 'scratch operand']
  #allocation3 [shape = 'f32[128,24]{1,0:T(8,128)}', space=vmem, size = 0x10000, scoped, tag = 'scratch operand']
  %s0 = inlined_call_operand.vmem [shape: f32[2,18,18,4], index: 0, kind: input, shape index: {}]
  %s1 = inlined_call_operand.vmem [shape: f32[2,18,18,4], index: 1, kind: input, shape index: {}]
  %s2 = inlined_call_operand.vmem [shape: f32[2,24,8], index: 2, kind: input, shape index: {}]
  %s3 = inlined_call_operand.vmem [shape: f32[1,8], index: 3, kind: input, shape index: {}]
  %s4 = inlined_call_operand.hbm [shape: f32[2,16,256], index: 4, kind: output, shape index: {}]
  %s5 = sld [smem:[#allocation0]]
  $region49: #{tpu_custom_call.1} parent=0
    _
  %s7 = ssub.s32 1, %s5
  %s8 = scalar_select 0, %s7, %s5
  $region1: #{tpu_custom_call.1} parent=0
    #allocation4 [shape = 'u8[16384]{0}', space=vmem, size = 0x4000, scoped, tag = 'output window, operand 0']
    #allocation5 [shape = 's32[2]{0}', space=sflag, size = 0x8, scoped, tag = 'scoped memory for tpu_custom_call.1']
    %9 = vsyncpa [#allocation5], 0
    %s10 = scalar_lea.sflag [#allocation5], 1
    %11 = vsyncpa %s10, 0
    loop: start=0, step=1, limit=6
    $region2: #{tpu_custom_call.1} parent=1 // loop_pre_header
      _
    $region3: #{tpu_custom_call.1} parent=1 // loop_header
      %s13 = sphi 0, %s17
      %p14 = scmp.ge.s32.totalorder %s13, 6
      %s20 = sphi 0, %s32
      %s21 = sphi 0, %s28
      %s22 = sphi 0, %s20
      %s23 = sphi 0, %s21
      %s24 = sphi 0, %s22
      %s25 = sphi 0, %s23
      %s37 = sphi 0, %s39
      %s40 = sphi 0, %s37
      %s41 = sphi 0, %s40
      %s57 = sphi 0, %s41
      %s69 = sphi 0, %s71
      %s72 = sphi 0, %s69
      %s73 = sphi 0, %s72
      %s89 = sphi 0, %s73
      %s93 = sphi 0, %s93
      %s95 = sphi 0, %s93
      %s96 = sphi 0, %s95
      %s110 = sphi 0, %s96
      %s114 = sphi 0, %s114
      %s116 = sphi 0, %s114
      %s117 = sphi 0, %s116
      %s131 = sphi 0, %s117
      %s139 = sphi 0, %s141
      %s142 = sphi 0, %s139
      %s143 = sphi 0, %s142
      %s159 = sphi 0, %s143
    $region4: #{tpu_custom_call.1} parent=1 // loop_header_branch
      %16 = sbr.rel (%p14) target = $region8
    $region5: #{tpu_custom_call.1} parent=1 // loop_body
      %s18 = ssub.s32 %s13, 1
      %s19 = ssub.s32 %s13, 2
      %s26 = sadd.s32 1, %s21
      %p27 = scmp.ge.s32.totalorder %s26, 2
      %s28 = scalar_select %p27, 0, %s26
      %s29 = sadd.s32 1, %s20
      %s30 = scalar_select %p27, %s29, %s20
      %p31 = scmp.ge.s32.totalorder %s30, 2
      %s32 = scalar_select %p31, 0, %s30
      %s33 = ssub.s32 %s20, %s32
      %s34 = ssub.s32 %s21, %s28
      %s35 = sor.u32 %s33, %s34
      %p36 = scmp.eq.s32.totalorder %s35, 0
      %s38 = sadd.s32 %s37, 1
      %s39 = scalar_select %p36, %s37, %s38
      %p42 = pneg %p36
      %p43 = scmp.eq.s32.totalorder %s13, 3
      %p44 = por %p42, %p43
      %p45 = scmp.ne.s32.totalorder %s37, %s40
      %p46 = scmp.eq.s32.totalorder %s13, 0
      %p47 = por %p45, %p46
      %p48 = scmp.ne.s32.totalorder %s37, %s40
      %p49 = scmp.eq.s32.totalorder %s18, 3
      %p50 = por %p48, %p49
      %p51 = scmp.ne.s32.totalorder %s40, %s41
      %p52 = scmp.eq.s32.totalorder %s18, 0
      %p53 = por %p51, %p52
      %p54 = scmp.ne.s32.totalorder %s40, %s41
      %p55 = scmp.eq.s32.totalorder %s19, 3
      %p56 = por %p54, %p55
      %p58 = scmp.ne.s32.totalorder %s41, %s57
      %p59 = scmp.eq.s32.totalorder %s19, 0
      %p60 = por %p58, %p59
      %s61 = sadd.s32 %s21, 1
      %s62 = smul.u32 %s61, 4
      %s63 = sadd.s32 %s28, 1
      %s64 = smul.u32 %s63, 4
      %s65 = ssub.s32 %s20, %s32
      %s66 = ssub.s32 %s62, %s64
      %s67 = sor.u32 %s65, %s66
      %p68 = scmp.eq.s32.totalorder %s67, 0
      %s70 = sadd.s32 %s69, 1
      %s71 = scalar_select %p68, %s69, %s70
      %p74 = pneg %p68
      %p75 = scmp.eq.s32.totalorder %s13, 3
      %p76 = por %p74, %p75
      %p77 = scmp.ne.s32.totalorder %s69, %s72
      %p78 = scmp.eq.s32.totalorder %s13, 0
      %p79 = por %p77, %p78
      %p80 = scmp.ne.s32.totalorder %s69, %s72
      %p81 = scmp.eq.s32.totalorder %s18, 3
      %p82 = por %p80, %p81
      %p83 = scmp.ne.s32.totalorder %s72, %s73
      %p84 = scmp.eq.s32.totalorder %s18, 0
      %p85 = por %p83, %p84
      %p86 = scmp.ne.s32.totalorder %s72, %s73
      %p87 = scmp.eq.s32.totalorder %s19, 3
      %p88 = por %p86, %p87
      %p90 = scmp.ne.s32.totalorder %s73, %s89
      %p91 = scmp.eq.s32.totalorder %s19, 0
      %p92 = por %p90, %p91
      %s94 = sadd.s32 %s93, 1
      %p97 = scmp.eq.s32.totalorder %s13, 3
      %p98 = scmp.ne.s32.totalorder %s93, %s95
      %p99 = scmp.eq.s32.totalorder %s13, 0
      %p100 = por %p98, %p99
      %p101 = scmp.ne.s32.totalorder %s93, %s95
      %p102 = scmp.eq.s32.totalorder %s18, 3
      %p103 = por %p101, %p102
      %p104 = scmp.ne.s32.totalorder %s95, %s96
      %p105 = scmp.eq.s32.totalorder %s18, 0
      %p106 = por %p104, %p105
      %p107 = scmp.ne.s32.totalorder %s95, %s96
      %p108 = scmp.eq.s32.totalorder %s19, 3
      %p109 = por %p107, %p108
      %p111 = scmp.ne.s32.totalorder %s96, %s110
      %p112 = scmp.eq.s32.totalorder %s19, 0
      %p113 = por %p111, %p112
      %s115 = sadd.s32 %s114, 1
      %p118 = scmp.eq.s32.totalorder %s13, 3
      %p119 = scmp.ne.s32.totalorder %s114, %s116
      %p120 = scmp.eq.s32.totalorder %s13, 0
      %p121 = por %p119, %p120
      %p122 = scmp.ne.s32.totalorder %s114, %s116
      %p123 = scmp.eq.s32.totalorder %s18, 3
      %p124 = por %p122, %p123
      %p125 = scmp.ne.s32.totalorder %s116, %s117
      %p126 = scmp.eq.s32.totalorder %s18, 0
      %p127 = por %p125, %p126
      %p128 = scmp.ne.s32.totalorder %s116, %s117
      %p129 = scmp.eq.s32.totalorder %s19, 3
      %p130 = por %p128, %p129
      %p132 = scmp.ne.s32.totalorder %s117, %s131
      %p133 = scmp.eq.s32.totalorder %s19, 0
      %p134 = por %p132, %p133
      %s135 = ssub.s32 %s20, %s32
      %s136 = ssub.s32 %s21, %s28
      %s137 = sor.u32 %s135, %s136
      %p138 = scmp.eq.s32.totalorder %s137, 0
      %s140 = sadd.s32 %s139, 1
      %s141 = scalar_select %p138, %s139, %s140
      %p144 = pneg %p138
      %p145 = scmp.eq.s32.totalorder %s13, 3
      %p146 = por %p144, %p145
      %p147 = scmp.ne.s32.totalorder %s139, %s142
      %p148 = scmp.eq.s32.totalorder %s13, 0
      %p149 = por %p147, %p148
      %p150 = scmp.ne.s32.totalorder %s139, %s142
      %p151 = scmp.eq.s32.totalorder %s18, 3
      %p152 = por %p150, %p151
      %p153 = scmp.ne.s32.totalorder %s142, %s143
      %p154 = scmp.eq.s32.totalorder %s18, 0
      %p155 = por %p153, %p154
      %p156 = scmp.ne.s32.totalorder %s142, %s143
      %p157 = scmp.eq.s32.totalorder %s19, 3
      %p158 = por %p156, %p157
      %p160 = scmp.ne.s32.totalorder %s143, %s159
      %p161 = scmp.eq.s32.totalorder %s19, 0
      %p162 = por %p160, %p161
      %p163 = scmp.le.s32.totalorder 1, %s13
      %p164 = scmp.lt.s32.totalorder %s13, 5
      %p165 = pnand %p163, %p164
      %p166 = pneg %p165
      // Predicated region
      $region9: #{tpu_custom_call.1} parent=5 // pred_check
        _
      $region10: #{tpu_custom_call.1} parent=5 // pred_check_branch
        %168 = sbr.rel (%p165) target = $region12
      $region11: #{tpu_custom_call.1} parent=5 // pred_region
        %s169 = ssub.s32 %s13, 1
        // Predicated region
        $region13: #{tpu_custom_call.1} parent=11 // pred_check
          %p170 = pneg %p106
        $region14: #{tpu_custom_call.1} parent=11 // pred_check_branch
          %172 = sbr.rel (%p170) target = $region16
        $region15: #{tpu_custom_call.1} parent=11 // pred_region
          _
        $region16: #{tpu_custom_call.1} parent=11 // pred_fallthru
          _
        // Predicated region
        $region17: #{tpu_custom_call.1} parent=11 // pred_check
          %p173 = pneg %p127
        $region18: #{tpu_custom_call.1} parent=11 // pred_check_branch
          %175 = sbr.rel (%p173) target = $region20
        $region19: #{tpu_custom_call.1} parent=11 // pred_region
          _
        $region20: #{tpu_custom_call.1} parent=11 // pred_fallthru
          _
      $region12: #{tpu_custom_call.1} parent=5 // pred_fallthru
        _
      %p176 = scmp.lt.s32.totalorder %s13, 4
      // Predicated region
      $region21: #{tpu_custom_call.1} parent=5 // pred_check
        %p177 = pneg %p176
      $region22: #{tpu_custom_call.1} parent=5 // pred_check_branch
        %179 = sbr.rel (%p177) target = $region24
      $region23: #{tpu_custom_call.1} parent=5 // pred_region
        // Predicated region
        $region25: #{tpu_custom_call.1} parent=23 // pred_check
          %p180 = pneg %p47
        $region26: #{tpu_custom_call.1} parent=23 // pred_check_branch
          %182 = sbr.rel (%p180) target = $region28
        $region27: #{tpu_custom_call.1} parent=23 // pred_region
          %s183 = smul.u32 8, %s21
          %s184 = ssub.s32 18, %s183
          %p185 = scmp.lt.s32.totalorder %s184, 8
          %s186 = scalar_select %p185, %s184, 8
          %s187 = smul.u32 128, %s186
          %s188 = smul.u32 %s187, 3
          %p189 = scmp.lt.s32.totalorder %s20, 1
          %s190 = scalar_select %p189, %s20, 1
          %p191 = scmp.lt.s32.totalorder %s183, 17
          %s192 = scalar_select %p191, %s183, 17
          %s193 = smul.addr %s192, 3
          %s194 = smul.addr %s190, 54
          %s195 = sadd.s32 %s193, %s194
          %s196 = smul.addr %s195, 8
          %s197 = scalar_lea.vmem %s0, %s196
          %s198 = smul.u32 8, %s21
          %s199 = ssub.s32 18, %s198
          %p200 = scmp.lt.s32.totalorder %s199, 8
          %s201 = scalar_select %p200, %s199, 8
          %s202 = smul.u32 128, %s201
          %s203 = smul.u32 %s202, 3
        $region28: #{tpu_custom_call.1} parent=23 // pred_fallthru
          _
        // Predicated region
        $region29: #{tpu_custom_call.1} parent=23 // pred_check
          %p204 = pneg %p79
        $region30: #{tpu_custom_call.1} parent=23 // pred_check_branch
          %206 = sbr.rel (%p204) target = $region32
        $region31: #{tpu_custom_call.1} parent=23 // pred_region
          %s207 = sadd.s32 %s21, 1
          %s208 = smul.u32 %s207, 4
          %s209 = smul.u32 2, %s208
          %p210 = scmp.lt.s32.totalorder %s20, 1
          %s211 = scalar_select %p210, %s20, 1
          %p212 = scmp.lt.s32.totalorder %s209, 17
          %s213 = scalar_select %p212, %s209, 17
          %s214 = smul.addr %s213, 3
          %s215 = smul.addr %s211, 54
          %s216 = sadd.s32 %s214, %s215
          %s217 = smul.addr %s216, 8
          %s218 = scalar_lea.vmem %s1, %s217
          %s219 = sadd.s32 %s21, 1
          %s220 = smul.u32 %s219, 4
          %s221 = smul.u32 2, %s220
        $region32: #{tpu_custom_call.1} parent=23 // pred_fallthru
          _
      $region24: #{tpu_custom_call.1} parent=5 // pred_fallthru
        _
      %p222 = scmp.le.s32.totalorder 1, %s13
      %p223 = scmp.lt.s32.totalorder %s13, 5
      %p224 = pnand %p222, %p223
      %p225 = pneg %p224
      // Predicated region
      $region33: #{tpu_custom_call.1} parent=5 // pred_check
        _
      $region34: #{tpu_custom_call.1} parent=5 // pred_check_branch
        %227 = sbr.rel (%p224) target = $region36
      $region35: #{tpu_custom_call.1} parent=5 // pred_region
        %s228 = ssub.s32 %s13, 1
        %s229 = smul.u32 8, %s23
        %s230 = ssub.s32 18, %s229
        %p231 = scmp.lt.s32.totalorder %s230, 8
        %s232 = scalar_select %p231, %s230, 8
        %s233 = smul.u32 128, %s232
        %s234 = smul.u32 %s233, 3
        %p235 = scmp.lt.s32.totalorder %s22, 1
        %s236 = scalar_select %p235, %s22, 1
        %p237 = scmp.lt.s32.totalorder %s229, 17
        %s238 = scalar_select %p237, %s229, 17
        %s239 = smul.addr %s238, 3
        %s240 = smul.addr %s236, 54
        %s241 = sadd.s32 %s239, %s240
        %s242 = smul.addr %s241, 8
        %s243 = scalar_lea.vmem %s0, %s242
        %p244 = pneg %p53
        %p245 = pneg %p50
        %s246 = sadd.s32 %s23, 1
        %s247 = smul.u32 %s246, 4
        %s248 = smul.u32 2, %s247
        %p249 = scmp.lt.s32.totalorder %s22, 1
        %s250 = scalar_select %p249, %s22, 1
        %p251 = scmp.lt.s32.totalorder %s248, 17
        %s252 = scalar_select %p251, %s248, 17
        %s253 = smul.addr %s252, 3
        %s254 = smul.addr %s250, 54
        %s255 = sadd.s32 %s253, %s254
        %s256 = smul.addr %s255, 8
        %s257 = scalar_lea.vmem %s1, %s256
        %p258 = pneg %p85
        %p259 = pneg %p82
        %p260 = pneg %p106
        %p261 = pneg %p103
        %p262 = pneg %p127
        %p263 = pneg %p124
        %p264 = pneg %p155
        %p265 = pneg %p152
        %s266 = sand.u32 %s142, 1
        %s267 = scalar_lea.sflag [#allocation5], %s266
        %s268 = sand.u32 %s142, 1
        %s269 = smul.addr %s268, 16
        %s270 = scalar_lea.vmem [#allocation4], %s269
        %s271 = smul.u32 8, %s23
        %s272 = ssub.s32 18, %s271
        %p273 = scmp.lt.s32.totalorder %s272, 8
        %s274 = scalar_select %p273, %s272, 8
        %s275 = smul.u32 128, %s274
        %s276 = smul.u32 %s275, 3
        %p277 = scmp.lt.s32.totalorder %s22, 1
        %s278 = scalar_select %p277, %s22, 1
        %p279 = scmp.lt.s32.totalorder %s271, 17
        %s280 = scalar_select %p279, %s271, 17
        %s281 = smul.addr %s280, 3
        %s282 = smul.addr %s278, 54
        %s283 = sadd.s32 %s281, %s282
        %s284 = smul.addr %s283, 8
        %s285 = scalar_lea.vmem %s0, %s284
        %s286 = smul.u32 8, %s23
        %s287 = ssub.s32 18, %s286
        %p288 = scmp.lt.s32.totalorder %s287, 8
        %s289 = scalar_select %p288, %s287, 8
        %s290 = smul.u32 128, %s289
        %s291 = smul.u32 %s290, 3
        %s292 = sadd.s32 %s23, 1
        %s293 = smul.u32 %s292, 4
        %s294 = smul.u32 2, %s293
        %p295 = scmp.lt.s32.totalorder %s22, 1
        %s296 = scalar_select %p295, %s22, 1
        %p297 = scmp.lt.s32.totalorder %s294, 17
        %s298 = scalar_select %p297, %s294, 17
        %s299 = smul.addr %s298, 3
        %s300 = smul.addr %s296, 54
        %s301 = sadd.s32 %s299, %s300
        %s302 = smul.addr %s301, 8
        %s303 = scalar_lea.vmem %s1, %s302
        %s304 = sadd.s32 %s23, 1
        %s305 = smul.u32 %s304, 4
        %s306 = smul.u32 2, %s305
        %v307 = vld [vmem:[%s285] sm:$0xff]
        %v308 = vld [vmem:[%s285 + $0x8] sm:$0xff]
        %v309 = vld [vmem:[%s285 + $0x10] sm:$0x3]
        %v310 = vld [vmem:[%s285 + $0x18] sm:$0xff]
        %v311 = vld [vmem:[%s285 + $0x20] sm:$0xff]
        %v312 = vld [vmem:[%s285 + $0x28] sm:$0x3]
        %v313 = vld [vmem:[%s285 + $0x30] sm:$0xff]
        %v314 = vld [vmem:[%s285 + $0x38] sm:$0xff]
        %v315 = vld [vmem:[%s285 + $0x40] sm:$0x3]
        %v316 = vld [vmem:[%s285 + $0x48] sm:$0xff]
        %v317 = vld [vmem:[%s285 + $0x50] sm:$0xff]
        %v318 = vld [vmem:[%s285 + $0x58] sm:$0x3]
        %v319 = vld [vmem:[%s285 + $0x60] sm:$0xff]
        %v320 = vld [vmem:[%s285 + $0x68] sm:$0xff]
        %v321 = vld [vmem:[%s285 + $0x70] sm:$0x3]
        %v322 = vld [vmem:[%s285 + $0x78] sm:$0xff]
        %v323 = vld [vmem:[%s285 + $0x80] sm:$0xff]
        %v324 = vld [vmem:[%s285 + $0x88] sm:$0x3]
        %v325 = vld [vmem:[%s285 + $0x90] sm:$0xff]
        %v326 = vld [vmem:[%s285 + $0x98] sm:$0xff]
        %v327 = vld [vmem:[%s285 + $0xa0] sm:$0x3]
        %v328 = vld [vmem:[%s285 + $0xa8] sm:$0xff]
        %v329 = vld [vmem:[%s285 + $0xb0] sm:$0xff]
        %v330 = vld [vmem:[%s285 + $0xb8] sm:$0x3]
        %vm331 = vcmask 31744
        %332 = vst.msk [vmem:[#allocation2] sm:$0xff] %vm331, %v307
        %333 = vst.msk [vmem:[#allocation2 + $0x8] sm:$0xff] %vm331, %v308
        %vm334 = vcmask 25600
        %335 = vst.msk [vmem:[#allocation2 + $0x10] sm:$0x3] %vm334, %v309
        %336 = vst.msk [vmem:[#allocation2 + $0x18] sm:$0xff] %vm331, %v310
        %337 = vst.msk [vmem:[#allocation2 + $0x20] sm:$0xff] %vm331, %v311
        %338 = vst.msk [vmem:[#allocation2 + $0x28] sm:$0x3] %vm334, %v312
        %339 = vst.msk [vmem:[#allocation2 + $0x30] sm:$0xff] %vm331, %v313
        %340 = vst.msk [vmem:[#allocation2 + $0x38] sm:$0xff] %vm331, %v314
        %341 = vst.msk [vmem:[#allocation2 + $0x40] sm:$0x3] %vm334, %v315
        %342 = vst.msk [vmem:[#allocation2 + $0x48] sm:$0xff] %vm331, %v316
        %343 = vst.msk [vmem:[#allocation2 + $0x50] sm:$0xff] %vm331, %v317
        %344 = vst.msk [vmem:[#allocation2 + $0x58] sm:$0x3] %vm334, %v318
        %345 = vst.msk [vmem:[#allocation2 + $0x60] sm:$0xff] %vm331, %v319
        %346 = vst.msk [vmem:[#allocation2 + $0x68] sm:$0xff] %vm331, %v320
        %347 = vst.msk [vmem:[#allocation2 + $0x70] sm:$0x3] %vm334, %v321
        %348 = vst.msk [vmem:[#allocation2 + $0x78] sm:$0xff] %vm331, %v322
        %349 = vst.msk [vmem:[#allocation2 + $0x80] sm:$0xff] %vm331, %v323
        %350 = vst.msk [vmem:[#allocation2 + $0x88] sm:$0x3] %vm334, %v324
        %351 = vst.msk [vmem:[#allocation2 + $0x90] sm:$0xff] %vm331, %v325
        %352 = vst.msk [vmem:[#allocation2 + $0x98] sm:$0xff] %vm331, %v326
        %353 = vst.msk [vmem:[#allocation2 + $0xa0] sm:$0x3] %vm334, %v327
        %354 = vst.msk [vmem:[#allocation2 + $0xa8] sm:$0xff] %vm331, %v328
        %355 = vst.msk [vmem:[#allocation2 + $0xb0] sm:$0xff] %vm331, %v329
        %356 = vst.msk [vmem:[#allocation2 + $0xb8] sm:$0x3] %vm334, %v330
        %v357 = vld [vmem:[%s303] sm:$0xff]
        %v358 = vld [vmem:[%s303 + $0x8] sm:$0xff]
        %v359 = vld [vmem:[%s303 + $0x10] sm:$0x3]
        %v360 = vld [vmem:[%s303 + $0x18] sm:$0xff]
        %v361 = vld [vmem:[%s303 + $0x20] sm:$0xff]
        %v362 = vld [vmem:[%s303 + $0x28] sm:$0x3]
        %s363 = scalar_lea.vmem [#allocation2], 192
        %364 = vst.msk [vmem:[%s363] sm:$0xff] %vm331, %v357
        %365 = vst.msk [vmem:[%s363 + $0x8] sm:$0xff] %vm331, %v358
        %366 = vst.msk [vmem:[%s363 + $0x10] sm:$0x3] %vm334, %v359
        %367 = vst.msk [vmem:[%s363 + $0x18] sm:$0xff] %vm331, %v360
        %368 = vst.msk [vmem:[%s363 + $0x20] sm:$0xff] %vm331, %v361
        %369 = vst.msk [vmem:[%s363 + $0x28] sm:$0x3] %vm334, %v362
        %v370 = vld [vmem:[%s3] sm:$0x1]
        %v371 = vld [vmem:[#allocation2] sm:$0xff]
        %v372 = vld [vmem:[#allocation2 + $0x8] sm:$0xff]
        %v373 = vld [vmem:[#allocation2 + $0x18] sm:$0xff]
        %v374 = vld [vmem:[#allocation2 + $0x20] sm:$0xff]
        %v375 = vld [vmem:[#allocation2 + $0x30] sm:$0xff]
        %v376 = vld [vmem:[#allocation2 + $0x38] sm:$0xff]
        %v377 = vld [vmem:[#allocation2 + $0x48] sm:$0xff]
        %v378 = vld [vmem:[#allocation2 + $0x50] sm:$0xff]
        %v379 = vld [vmem:[#allocation2 + $0x60] sm:$0xff]
        %v380 = vld [vmem:[#allocation2 + $0x68] sm:$0xff]
        %v381 = vld [vmem:[#allocation2 + $0x78] sm:$0xff]
        %v382 = vld [vmem:[#allocation2 + $0x80] sm:$0xff]
        %v383 = vld [vmem:[#allocation2 + $0x90] sm:$0xff]
        %v384 = vld [vmem:[#allocation2 + $0x98] sm:$0xff]
        %v385 = vld [vmem:[#allocation2 + $0xa8] sm:$0xff]
        %v386 = vld [vmem:[#allocation2 + $0xb0] sm:$0xff]
        %387 = vst.msk [vmem:[#allocation3] sm:$0xff] %vm331, %v371
        %388 = vst.msk [vmem:[#allocation3 + $0x8] sm:$0xff] %vm331, %v372
        %389 = vst.msk [vmem:[#allocation3 + $0x10] sm:$0xff] %vm331, %v373
        %390 = vst.msk [vmem:[#allocation3 + $0x18] sm:$0xff] %vm331, %v374
        %391 = vst.msk [vmem:[#allocation3 + $0x20] sm:$0xff] %vm331, %v375
        %392 = vst.msk [vmem:[#allocation3 + $0x28] sm:$0xff] %vm331, %v376
        %393 = vst.msk [vmem:[#allocation3 + $0x30] sm:$0xff] %vm331, %v377
        %394 = vst.msk [vmem:[#allocation3 + $0x38] sm:$0xff] %vm331, %v378
        %395 = vst.msk [vmem:[#allocation3 + $0x40] sm:$0xff] %vm331, %v379
        %396 = vst.msk [vmem:[#allocation3 + $0x48] sm:$0xff] %vm331, %v380
        %397 = vst.msk [vmem:[#allocation3 + $0x50] sm:$0xff] %vm331, %v381
        %398 = vst.msk [vmem:[#allocation3 + $0x58] sm:$0xff] %vm331, %v382
        %399 = vst.msk [vmem:[#allocation3 + $0x60] sm:$0xff] %vm331, %v383
        %400 = vst.msk [vmem:[#allocation3 + $0x68] sm:$0xff] %vm331, %v384
        %401 = vst.msk [vmem:[#allocation3 + $0x70] sm:$0xff] %vm331, %v385
        %402 = vst.msk [vmem:[#allocation3 + $0x78] sm:$0xff] %vm331, %v386
        %v403 = vld [vmem:[#allocation2 + $0x1] sm:$0xff]
        %v404 = vld [vmem:[#allocation2 + $0x9] sm:$0xff]
        %v405 = vld [vmem:[#allocation2 + $0x19] sm:$0xff]
        %v406 = vld [vmem:[#allocation2 + $0x21] sm:$0xff]
        %v407 = vld [vmem:[#allocation2 + $0x31] sm:$0xff]
        %v408 = vld [vmem:[#allocation2 + $0x39] sm:$0xff]
        %v409 = vld [vmem:[#allocation2 + $0x49] sm:$0xff]
        %v410 = vld [vmem:[#allocation2 + $0x51] sm:$0xff]
        %v411 = vld [vmem:[#allocation2 + $0x61] sm:$0xff]
        %v412 = vld [vmem:[#allocation2 + $0x69] sm:$0xff]
        %v413 = vld [vmem:[#allocation2 + $0x79] sm:$0xff]
        %v414 = vld [vmem:[#allocation2 + $0x81] sm:$0xff]
        %v415 = vld [vmem:[#allocation2 + $0x91] sm:$0xff]
        %v416 = vld [vmem:[#allocation2 + $0x99] sm:$0xff]
        %v417 = vld [vmem:[#allocation2 + $0xa9] sm:$0xff]
        %v418 = vld [vmem:[#allocation2 + $0xb1] sm:$0xff]
        %435 = vrot.lane.b32.xlu0 %v403, 4
        %v436 = vpop.permute.xlu0 %435
        %437 = vrot.lane.b32.xlu0 %v404, 4
        %v438 = vpop.permute.xlu0 %437
        %439 = vrot.lane.b32.xlu0 %v405, 4
        %v440 = vpop.permute.xlu0 %439
        %441 = vrot.lane.b32.xlu0 %v406, 4
        %v442 = vpop.permute.xlu0 %441
        %443 = vrot.lane.b32.xlu0 %v407, 4
        %v444 = vpop.permute.xlu0 %443
        %445 = vrot.lane.b32.xlu0 %v408, 4
        %v446 = vpop.permute.xlu0 %445
        %447 = vrot.lane.b32.xlu0 %v409, 4
        %v448 = vpop.permute.xlu0 %447
        %449 = vrot.lane.b32.xlu0 %v410, 4
        %v450 = vpop.permute.xlu0 %449
        %451 = vrot.lane.b32.xlu0 %v411, 4
        %v452 = vpop.permute.xlu0 %451
        %453 = vrot.lane.b32.xlu0 %v412, 4
        %v454 = vpop.permute.xlu0 %453
        %455 = vrot.lane.b32.xlu0 %v413, 4
        %v456 = vpop.permute.xlu0 %455
        %457 = vrot.lane.b32.xlu0 %v414, 4
        %v458 = vpop.permute.xlu0 %457
        %459 = vrot.lane.b32.xlu0 %v415, 4
        %v460 = vpop.permute.xlu0 %459
        %461 = vrot.lane.b32.xlu0 %v416, 4
        %v462 = vpop.permute.xlu0 %461
        %463 = vrot.lane.b32.xlu0 %v417, 4
        %v464 = vpop.permute.xlu0 %463
        %465 = vrot.lane.b32.xlu0 %v418, 4
        %v466 = vpop.permute.xlu0 %465
        %vm483 = vcmask 64544
        %484 = vst.msk [vmem:[#allocation3] sm:$0xff] %vm483, %v436
        %485 = vst.msk [vmem:[#allocation3 + $0x8] sm:$0xff] %vm483, %v438
        %486 = vst.msk [vmem:[#allocation3 + $0x10] sm:$0xff] %vm483, %v440
        %487 = vst.msk [vmem:[#allocation3 + $0x18] sm:$0xff] %vm483, %v442
        %488 = vst.msk [vmem:[#allocation3 + $0x20] sm:$0xff] %vm483, %v444
        %489 = vst.msk [vmem:[#allocation3 + $0x28] sm:$0xff] %vm483, %v446
        %490 = vst.msk [vmem:[#allocation3 + $0x30] sm:$0xff] %vm483, %v448
        %491 = vst.msk [vmem:[#allocation3 + $0x38] sm:$0xff] %vm483, %v450
        %492 = vst.msk [vmem:[#allocation3 + $0x40] sm:$0xff] %vm483, %v452
        %493 = vst.msk [vmem:[#allocation3 + $0x48] sm:$0xff] %vm483, %v454
        %494 = vst.msk [vmem:[#allocation3 + $0x50] sm:$0xff] %vm483, %v456
        %495 = vst.msk [vmem:[#allocation3 + $0x58] sm:$0xff] %vm483, %v458
        %496 = vst.msk [vmem:[#allocation3 + $0x60] sm:$0xff] %vm483, %v460
        %497 = vst.msk [vmem:[#allocation3 + $0x68] sm:$0xff] %vm483, %v462
        %498 = vst.msk [vmem:[#allocation3 + $0x70] sm:$0xff] %vm483, %v464
        %499 = vst.msk [vmem:[#allocation3 + $0x78] sm:$0xff] %vm483, %v466
        %v500 = vld [vmem:[#allocation2 + $0x2] sm:$0xff]
        %v501 = vld [vmem:[#allocation2 + $0xa] sm:$0xff]
        %v502 = vld [vmem:[#allocation2 + $0x1a] sm:$0xff]
        %v503 = vld [vmem:[#allocation2 + $0x22] sm:$0xff]
        %v504 = vld [vmem:[#allocation2 + $0x32] sm:$0xff]
        %v505 = vld [vmem:[#allocation2 + $0x3a] sm:$0xff]
        %v506 = vld [vmem:[#allocation2 + $0x4a] sm:$0xff]
        %v507 = vld [vmem:[#allocation2 + $0x52] sm:$0xff]
        %v508 = vld [vmem:[#allocation2 + $0x62] sm:$0xff]
        %v509 = vld [vmem:[#allocation2 + $0x6a] sm:$0xff]
        %v510 = vld [vmem:[#allocation2 + $0x7a] sm:$0xff]
        %v511 = vld [vmem:[#allocation2 + $0x82] sm:$0xff]
        %v512 = vld [vmem:[#allocation2 + $0x92] sm:$0xff]
        %v513 = vld [vmem:[#allocation2 + $0x9a] sm:$0xff]
        %v514 = vld [vmem:[#allocation2 + $0xaa] sm:$0xff]
        %v515 = vld [vmem:[#allocation2 + $0xb2] sm:$0xff]
        %532 = vrot.lane.b32.xlu0 %v500, 8
        %v533 = vpop.permute.xlu0 %532
        %534 = vrot.lane.b32.xlu0 %v501, 8
        %v535 = vpop.permute.xlu0 %534
        %536 = vrot.lane.b32.xlu0 %v502, 8
        %v537 = vpop.permute.xlu0 %536
        %538 = vrot.lane.b32.xlu0 %v503, 8
        %v539 = vpop.permute.xlu0 %538
        %540 = vrot.lane.b32.xlu0 %v504, 8
        %v541 = vpop.permute.xlu0 %540
        %542 = vrot.lane.b32.xlu0 %v505, 8
        %v543 = vpop.permute.xlu0 %542
        %544 = vrot.lane.b32.xlu0 %v506, 8
        %v545 = vpop.permute.xlu0 %544
        %546 = vrot.lane.b32.xlu0 %v507, 8
        %v547 = vpop.permute.xlu0 %546
        %548 = vrot.lane.b32.xlu0 %v508, 8
        %v549 = vpop.permute.xlu0 %548
        %550 = vrot.lane.b32.xlu0 %v509, 8
        %v551 = vpop.permute.xlu0 %550
        %552 = vrot.lane.b32.xlu0 %v510, 8
        %v553 = vpop.permute.xlu0 %552
        %554 = vrot.lane.b32.xlu0 %v511, 8
        %v555 = vpop.permute.xlu0 %554
        %556 = vrot.lane.b32.xlu0 %v512, 8
        %v557 = vpop.permute.xlu0 %556
        %558 = vrot.lane.b32.xlu0 %v513, 8
        %v559 = vpop.permute.xlu0 %558
        %560 = vrot.lane.b32.xlu0 %v514, 8
        %v561 = vpop.permute.xlu0 %560
        %562 = vrot.lane.b32.xlu0 %v515, 8
        %v563 = vpop.permute.xlu0 %562
        %vm580 = vcmask 97344
        %581 = vst.msk [vmem:[#allocation3] sm:$0xff] %vm580, %v533
        %582 = vst.msk [vmem:[#allocation3 + $0x8] sm:$0xff] %vm580, %v535
        %583 = vst.msk [vmem:[#allocation3 + $0x10] sm:$0xff] %vm580, %v537
        %584 = vst.msk [vmem:[#allocation3 + $0x18] sm:$0xff] %vm580, %v539
        %585 = vst.msk [vmem:[#allocation3 + $0x20] sm:$0xff] %vm580, %v541
        %586 = vst.msk [vmem:[#allocation3 + $0x28] sm:$0xff] %vm580, %v543
        %587 = vst.msk [vmem:[#allocation3 + $0x30] sm:$0xff] %vm580, %v545
        %588 = vst.msk [vmem:[#allocation3 + $0x38] sm:$0xff] %vm580, %v547
        %589 = vst.msk [vmem:[#allocation3 + $0x40] sm:$0xff] %vm580, %v549
        %590 = vst.msk [vmem:[#allocation3 + $0x48] sm:$0xff] %vm580, %v551
        %591 = vst.msk [vmem:[#allocation3 + $0x50] sm:$0xff] %vm580, %v553
        %592 = vst.msk [vmem:[#allocation3 + $0x58] sm:$0xff] %vm580, %v555
        %593 = vst.msk [vmem:[#allocation3 + $0x60] sm:$0xff] %vm580, %v557
        %594 = vst.msk [vmem:[#allocation3 + $0x68] sm:$0xff] %vm580, %v559
        %595 = vst.msk [vmem:[#allocation3 + $0x70] sm:$0xff] %vm580, %v561
        %596 = vst.msk [vmem:[#allocation3 + $0x78] sm:$0xff] %vm580, %v563
        %s597 = scalar_lea.vmem [#allocation2], 24
        %v598 = vld [vmem:[%s597] sm:$0xff]
        %v599 = vld [vmem:[%s597 + $0x8] sm:$0xff]
        %v600 = vld [vmem:[%s597 + $0x18] sm:$0xff]
        %v601 = vld [vmem:[%s597 + $0x20] sm:$0xff]
        %v602 = vld [vmem:[%s597 + $0x30] sm:$0xff]
        %v603 = vld [vmem:[%s597 + $0x38] sm:$0xff]
        %v604 = vld [vmem:[%s597 + $0x48] sm:$0xff]
        %v605 = vld [vmem:[%s597 + $0x50] sm:$0xff]
        %v606 = vld [vmem:[%s597 + $0x60] sm:$0xff]
        %v607 = vld [vmem:[%s597 + $0x68] sm:$0xff]
        %v608 = vld [vmem:[%s597 + $0x78] sm:$0xff]
        %v609 = vld [vmem:[%s597 + $0x80] sm:$0xff]
        %v610 = vld [vmem:[%s597 + $0x90] sm:$0xff]
        %v611 = vld [vmem:[%s597 + $0x98] sm:$0xff]
        %v612 = vld [vmem:[%s597 + $0xa8] sm:$0xff]
        %v613 = vld [vmem:[%s597 + $0xb0] sm:$0xff]
        %630 = vrot.lane.b32.xlu0 %v598, 12
        %v631 = vpop.permute.xlu0 %630
        %632 = vrot.lane.b32.xlu0 %v599, 12
        %v633 = vpop.permute.xlu0 %632
        %634 = vrot.lane.b32.xlu0 %v600, 12
        %v635 = vpop.permute.xlu0 %634
        %636 = vrot.lane.b32.xlu0 %v601, 12
        %v637 = vpop.permute.xlu0 %636
        %638 = vrot.lane.b32.xlu0 %v602, 12
        %v639 = vpop.permute.xlu0 %638
        %640 = vrot.lane.b32.xlu0 %v603, 12
        %v641 = vpop.permute.xlu0 %640
        %642 = vrot.lane.b32.xlu0 %v604, 12
        %v643 = vpop.permute.xlu0 %642
        %644 = vrot.lane.b32.xlu0 %v605, 12
        %v645 = vpop.permute.xlu0 %644
        %646 = vrot.lane.b32.xlu0 %v606, 12
        %v647 = vpop.permute.xlu0 %646
        %648 = vrot.lane.b32.xlu0 %v607, 12
        %v649 = vpop.permute.xlu0 %648
        %650 = vrot.lane.b32.xlu0 %v608, 12
        %v651 = vpop.permute.xlu0 %650
        %652 = vrot.lane.b32.xlu0 %v609, 12
        %v653 = vpop.permute.xlu0 %652
        %654 = vrot.lane.b32.xlu0 %v610, 12
        %v655 = vpop.permute.xlu0 %654
        %656 = vrot.lane.b32.xlu0 %v611, 12
        %v657 = vpop.permute.xlu0 %656
        %658 = vrot.lane.b32.xlu0 %v612, 12
        %v659 = vpop.permute.xlu0 %658
        %660 = vrot.lane.b32.xlu0 %v613, 12
        %v661 = vpop.permute.xlu0 %660
        %vm678 = vcmask 130144
        %679 = vst.msk [vmem:[#allocation3] sm:$0xff] %vm678, %v631
        %680 = vst.msk [vmem:[#allocation3 + $0x8] sm:$0xff] %vm678, %v633
        %681 = vst.msk [vmem:[#allocation3 + $0x10] sm:$0xff] %vm678, %v635
        %682 = vst.msk [vmem:[#allocation3 + $0x18] sm:$0xff] %vm678, %v637
        %683 = vst.msk [vmem:[#allocation3 + $0x20] sm:$0xff] %vm678, %v639
        %684 = vst.msk [vmem:[#allocation3 + $0x28] sm:$0xff] %vm678, %v641
        %685 = vst.msk [vmem:[#allocation3 + $0x30] sm:$0xff] %vm678, %v643
        %686 = vst.msk [vmem:[#allocation3 + $0x38] sm:$0xff] %vm678, %v645
        %687 = vst.msk [vmem:[#allocation3 + $0x40] sm:$0xff] %vm678, %v647
        %688 = vst.msk [vmem:[#allocation3 + $0x48] sm:$0xff] %vm678, %v649
        %689 = vst.msk [vmem:[#allocation3 + $0x50] sm:$0xff] %vm678, %v651
        %690 = vst.msk [vmem:[#allocation3 + $0x58] sm:$0xff] %vm678, %v653
        %691 = vst.msk [vmem:[#allocation3 + $0x60] sm:$0xff] %vm678, %v655
        %692 = vst.msk [vmem:[#allocation3 + $0x68] sm:$0xff] %vm678, %v657
        %693 = vst.msk [vmem:[#allocation3 + $0x70] sm:$0xff] %vm678, %v659
        %694 = vst.msk [vmem:[#allocation3 + $0x78] sm:$0xff] %vm678, %v661
        %v695 = vld [vmem:[%s597 + $0x1] sm:$0xff]
        %v696 = vld [vmem:[%s597 + $0x9] sm:$0xff]
        %v697 = vld [vmem:[%s597 + $0x19] sm:$0xff]
        %v698 = vld [vmem:[%s597 + $0x21] sm:$0xff]
        %v699 = vld [vmem:[%s597 + $0x31] sm:$0xff]
        %v700 = vld [vmem:[%s597 + $0x39] sm:$0xff]
        %v701 = vld [vmem:[%s597 + $0x49] sm:$0xff]
        %v702 = vld [vmem:[%s597 + $0x51] sm:$0xff]
        %v703 = vld [vmem:[%s597 + $0x61] sm:$0xff]
        %v704 = vld [vmem:[%s597 + $0x69] sm:$0xff]
        %v705 = vld [vmem:[%s597 + $0x79] sm:$0xff]
        %v706 = vld [vmem:[%s597 + $0x81] sm:$0xff]
        %v707 = vld [vmem:[%s597 + $0x91] sm:$0xff]
        %v708 = vld [vmem:[%s597 + $0x99] sm:$0xff]
        %v709 = vld [vmem:[%s597 + $0xa9] sm:$0xff]
        %v710 = vld [vmem:[%s597 + $0xb1] sm:$0xff]
        %727 = vrot.lane.b32.xlu0 %v695, 16
        %v728 = vpop.permute.xlu0 %727
        %729 = vrot.lane.b32.xlu0 %v696, 16
        %v730 = vpop.permute.xlu0 %729
        %731 = vrot.lane.b32.xlu0 %v697, 16
        %v732 = vpop.permute.xlu0 %731
        %733 = vrot.lane.b32.xlu0 %v698, 16
        %v734 = vpop.permute.xlu0 %733
        %735 = vrot.lane.b32.xlu0 %v699, 16
        %v736 = vpop.permute.xlu0 %735
        %737 = vrot.lane.b32.xlu0 %v700, 16
        %v738 = vpop.permute.xlu0 %737
        %739 = vrot.lane.b32.xlu0 %v701, 16
        %v740 = vpop.permute.xlu0 %739
        %741 = vrot.lane.b32.xlu0 %v702, 16
        %v742 = vpop.permute.xlu0 %741
        %743 = vrot.lane.b32.xlu0 %v703, 16
        %v744 = vpop.permute.xlu0 %743
        %745 = vrot.lane.b32.xlu0 %v704, 16
        %v746 = vpop.permute.xlu0 %745
        %747 = vrot.lane.b32.xlu0 %v705, 16
        %v748 = vpop.permute.xlu0 %747
        %749 = vrot.lane.b32.xlu0 %v706, 16
        %v750 = vpop.permute.xlu0 %749
        %751 = vrot.lane.b32.xlu0 %v707, 16
        %v752 = vpop.permute.xlu0 %751
        %753 = vrot.lane.b32.xlu0 %v708, 16
        %v754 = vpop.permute.xlu0 %753
        %755 = vrot.lane.b32.xlu0 %v709, 16
        %v756 = vpop.permute.xlu0 %755
        %757 = vrot.lane.b32.xlu0 %v710, 16
        %v758 = vpop.permute.xlu0 %757
        %vm775 = vcmask 162944
        %776 = vst.msk [vmem:[#allocation3] sm:$0xff] %vm775, %v728
        %777 = vst.msk [vmem:[#allocation3 + $0x8] sm:$0xff] %vm775, %v730
        %778 = vst.msk [vmem:[#allocation3 + $0x10] sm:$0xff] %vm775, %v732
        %779 = vst.msk [vmem:[#allocation3 + $0x18] sm:$0xff] %vm775, %v734
        %780 = vst.msk [vmem:[#allocation3 + $0x20] sm:$0xff] %vm775, %v736
        %781 = vst.msk [vmem:[#allocation3 + $0x28] sm:$0xff] %vm775, %v738
        %782 = vst.msk [vmem:[#allocation3 + $0x30] sm:$0xff] %vm775, %v740
        %783 = vst.msk [vmem:[#allocation3 + $0x38] sm:$0xff] %vm775, %v742
        %784 = vst.msk [vmem:[#allocation3 + $0x40] sm:$0xff] %vm775, %v744
        %785 = vst.msk [vmem:[#allocation3 + $0x48] sm:$0xff] %vm775, %v746
        %786 = vst.msk [vmem:[#allocation3 + $0x50] sm:$0xff] %vm775, %v748
        %787 = vst.msk [vmem:[#allocation3 + $0x58] sm:$0xff] %vm775, %v750
        %788 = vst.msk [vmem:[#allocation3 + $0x60] sm:$0xff] %vm775, %v752
        %789 = vst.msk [vmem:[#allocation3 + $0x68] sm:$0xff] %vm775, %v754
        %790 = vst.msk [vmem:[#allocation3 + $0x70] sm:$0xff] %vm775, %v756
        %791 = vst.msk [vmem:[#allocation3 + $0x78] sm:$0xff] %vm775, %v758
        %v792 = vld [vmem:[%s597 + $0x2] sm:$0xff]
        %v793 = vld [vmem:[%s597 + $0xa] sm:$0xff]
        %v794 = vld [vmem:[%s597 + $0x1a] sm:$0xff]
        %v795 = vld [vmem:[%s597 + $0x22] sm:$0xff]
        %v796 = vld [vmem:[%s597 + $0x32] sm:$0xff]
        %v797 = vld [vmem:[%s597 + $0x3a] sm:$0xff]
        %v798 = vld [vmem:[%s597 + $0x4a] sm:$0xff]
        %v799 = vld [vmem:[%s597 + $0x52] sm:$0xff]
        %v800 = vld [vmem:[%s597 + $0x62] sm:$0xff]
        %v801 = vld [vmem:[%s597 + $0x6a] sm:$0xff]
        %v802 = vld [vmem:[%s597 + $0x7a] sm:$0xff]
        %v803 = vld [vmem:[%s597 + $0x82] sm:$0xff]
        %v804 = vld [vmem:[%s597 + $0x92] sm:$0xff]
        %v805 = vld [vmem:[%s597 + $0x9a] sm:$0xff]
        %v806 = vld [vmem:[%s597 + $0xaa] sm:$0xff]
        %v807 = vld [vmem:[%s597 + $0xb2] sm:$0xff]
        %824 = vrot.lane.b32.xlu0 %v792, 20
        %v825 = vpop.permute.xlu0 %824
        %826 = vrot.lane.b32.xlu0 %v793, 20
        %v827 = vpop.permute.xlu0 %826
        %828 = vrot.lane.b32.xlu0 %v794, 20
        %v829 = vpop.permute.xlu0 %828
        %830 = vrot.lane.b32.xlu0 %v795, 20
        %v831 = vpop.permute.xlu0 %830
        %832 = vrot.lane.b32.xlu0 %v796, 20
        %v833 = vpop.permute.xlu0 %832
        %834 = vrot.lane.b32.xlu0 %v797, 20
        %v835 = vpop.permute.xlu0 %834
        %836 = vrot.lane.b32.xlu0 %v798, 20
        %v837 = vpop.permute.xlu0 %836
        %838 = vrot.lane.b32.xlu0 %v799, 20
        %v839 = vpop.permute.xlu0 %838
        %840 = vrot.lane.b32.xlu0 %v800, 20
        %v841 = vpop.permute.xlu0 %840
        %842 = vrot.lane.b32.xlu0 %v801, 20
        %v843 = vpop.permute.xlu0 %842
        %844 = vrot.lane.b32.xlu0 %v802, 20
        %v845 = vpop.permute.xlu0 %844
        %846 = vrot.lane.b32.xlu0 %v803, 20
        %v847 = vpop.permute.xlu0 %846
        %848 = vrot.lane.b32.xlu0 %v804, 20
        %v849 = vpop.permute.xlu0 %848
        %850 = vrot.lane.b32.xlu0 %v805, 20
        %v851 = vpop.permute.xlu0 %850
        %852 = vrot.lane.b32.xlu0 %v806, 20
        %v853 = vpop.permute.xlu0 %852
        %854 = vrot.lane.b32.xlu0 %v807, 20
        %v855 = vpop.permute.xlu0 %854
        %vm872 = vcmask 195744
        %873 = vst.msk [vmem:[#allocation3] sm:$0xff] %vm872, %v825
        %874 = vst.msk [vmem:[#allocation3 + $0x8] sm:$0xff] %vm872, %v827
        %875 = vst.msk [vmem:[#allocation3 + $0x10] sm:$0xff] %vm872, %v829
        %876 = vst.msk [vmem:[#allocation3 + $0x18] sm:$0xff] %vm872, %v831
        %877 = vst.msk [vmem:[#allocation3 + $0x20] sm:$0xff] %vm872, %v833
        %878 = vst.msk [vmem:[#allocation3 + $0x28] sm:$0xff] %vm872, %v835
        %879 = vst.msk [vmem:[#allocation3 + $0x30] sm:$0xff] %vm872, %v837
        %880 = vst.msk [vmem:[#allocation3 + $0x38] sm:$0xff] %vm872, %v839
        %881 = vst.msk [vmem:[#allocation3 + $0x40] sm:$0xff] %vm872, %v841
        %882 = vst.msk [vmem:[#allocation3 + $0x48] sm:$0xff] %vm872, %v843
        %883 = vst.msk [vmem:[#allocation3 + $0x50] sm:$0xff] %vm872, %v845
        %884 = vst.msk [vmem:[#allocation3 + $0x58] sm:$0xff] %vm872, %v847
        %885 = vst.msk [vmem:[#allocation3 + $0x60] sm:$0xff] %vm872, %v849
        %886 = vst.msk [vmem:[#allocation3 + $0x68] sm:$0xff] %vm872, %v851
        %887 = vst.msk [vmem:[#allocation3 + $0x70] sm:$0xff] %vm872, %v853
        %888 = vst.msk [vmem:[#allocation3 + $0x78] sm:$0xff] %vm872, %v855
        %v889 = vld [vmem:[#allocation3] sm:$0xff]
        %v890 = vld [vmem:[#allocation3 + $0x8] sm:$0xff]
        %v891 = vld [vmem:[#allocation3 + $0x10] sm:$0xff]
        %v892 = vld [vmem:[#allocation3 + $0x18] sm:$0xff]
        %v893 = vld [vmem:[#allocation3 + $0x20] sm:$0xff]
        %v894 = vld [vmem:[#allocation3 + $0x28] sm:$0xff]
        %v895 = vld [vmem:[#allocation3 + $0x30] sm:$0xff]
        %v896 = vld [vmem:[#allocation3 + $0x38] sm:$0xff]
        %v897 = vld [vmem:[#allocation3 + $0x40] sm:$0xff]
        %v898 = vld [vmem:[#allocation3 + $0x48] sm:$0xff]
        %v899 = vld [vmem:[#allocation3 + $0x50] sm:$0xff]
        %v900 = vld [vmem:[#allocation3 + $0x58] sm:$0xff]
        %v901 = vld [vmem:[#allocation3 + $0x60] sm:$0xff]
        %v902 = vld [vmem:[#allocation3 + $0x68] sm:$0xff]
        %v903 = vld [vmem:[#allocation3 + $0x70] sm:$0xff]
        %v904 = vld [vmem:[#allocation3 + $0x78] sm:$0xff]
        %v905 = vld [vmem:[%s2] sm:$0xff]
        %v906 = vld [vmem:[%s2 + $0x8] sm:$0xff]
        %v907 = vld [vmem:[%s2 + $0x10] sm:$0xff]
        %v909 = vlaneseq
        %v910 = vshrl.u32 %v909, 7
        %v911 = vsub.s32 0, %v910
        %v912 = vrot.slane %v370, %v911
        %vm914 = vcmask 195584
        %v916 = vsel %vm914, %v889, 0
        %v919 = vsel %vm914, %v890, 0
        %v922 = vsel %vm914, %v891, 0
        %v925 = vsel %vm914, %v892, 0
        %v928 = vsel %vm914, %v893, 0
        %v931 = vsel %vm914, %v894, 0
        %v934 = vsel %vm914, %v895, 0
        %v937 = vsel %vm914, %v896, 0
        %v940 = vsel %vm914, %v897, 0
        %v943 = vsel %vm914, %v898, 0
        %v946 = vsel %vm914, %v899, 0
        %v949 = vsel %vm914, %v900, 0
        %v952 = vsel %vm914, %v901, 0
        %v955 = vsel %vm914, %v902, 0
        %v958 = vsel %vm914, %v903, 0
        %v961 = vsel %vm914, %v904, 0
        %963 = vmatprep.subr.mxu0 0.0
        %964 = vmatpush1.msra.mxu0 %v905
        %965 = vmatprep.subr.mxu0 0.0
        %966 = vmatpush1.msra.mxu0 %v906
        %967 = vmatprep.subr.mxu0 0.0
        %968 = vmatpush1.msra.mxu0 %v907
        %969 = vmatprep.subr.mxu0 0.0
        %970 = vmatpush1.msra.mxu0 0.0
        %971 = vmatprep.subr.mxu0 0.0
        %972 = vmatpush1.msra.mxu0 0.0
        %973 = vmatprep.subr.mxu0 0.0
        %974 = vmatpush1.msra.mxu0 0.0
        %975 = vmatprep.subr.mxu0 0.0
        %976 = vmatpush1.msra.mxu0 0.0
        %977 = vmatprep.subr.mxu0 0.0
        %978 = vmatpush1.msra.mxu0 0.0
        %979 = vmatprep.subr.mxu0 0.0
        %980 = vmatpush1.msra.mxu0 0.0
        %981 = vmatprep.subr.mxu0 0.0
        %982 = vmatpush1.msra.mxu0 0.0
        %983 = vmatprep.subr.mxu0 0.0
        %984 = vmatpush1.msra.mxu0 0.0
        %985 = vmatprep.subr.mxu0 0.0
        %986 = vmatpush1.msra.mxu0 0.0
        %987 = vmatprep.subr.mxu0 0.0
        %988 = vmatpush1.msra.mxu0 0.0
        %989 = vmatprep.subr.mxu0 0.0
        %990 = vmatpush1.msra.mxu0 0.0
        %991 = vmatprep.subr.mxu0 0.0
        %992 = vmatpush1.msra.mxu0 0.0
        %993 = vmatprep.subr.mxu0 0.0
        %994 = vmatpush1.msra.mxu0 0.0
        %995 = vmatprep.subr.mxu0 0.0
        %996 = vmatpush1.msra.mxu0 0.0
        %997 = vmatprep.subr.mxu0 0.0
        %998 = vmatpush1.msra.mxu0 0.0
        %999 = vmatprep.subr.mxu0 0.0
        %1000 = vmatpush1.msra.mxu0 0.0
        %1001 = vmatprep.subr.mxu0 0.0
        %1002 = vmatpush1.msra.mxu0 0.0
        %1003 = vmatprep.subr.mxu0 0.0
        %1004 = vmatpush1.msra.mxu0 0.0
        %1005 = vmatprep.subr.mxu0 0.0
        %1006 = vmatpush1.msra.mxu0 0.0
        %1007 = vmatprep.subr.mxu0 0.0
        %1008 = vmatpush1.msra.mxu0 0.0
        %1009 = vmatprep.subr.mxu0 0.0
        %1010 = vmatpush1.msra.mxu0 0.0
        %1011 = vmatprep.subr.mxu0 0.0
        %1012 = vmatpush1.msra.mxu0 0.0
        %1013 = vmatprep.subr.mxu0 0.0
        %1014 = vmatpush1.msra.mxu0 0.0
        %1015 = vmatprep.subr.mxu0 0.0
        %1016 = vmatpush1.msra.mxu0 0.0
        %1017 = vmatprep.subr.mxu0 0.0
        %1018 = vmatpush1.msra.mxu0 0.0
        %1019 = vmatprep.subr.mxu0 0.0
        %1020 = vmatpush1.msra.mxu0 0.0
        %1021 = vmatprep.subr.mxu0 0.0
        %1022 = vmatpush1.msra.mxu0 0.0
        %1023 = vmatprep.subr.mxu0 0.0
        %1024 = vmatpush1.msra.mxu0 0.0
        %1025 = vmatprep.subr.mxu0 0.0
        %1026 = vmatpush1.msra.mxu0 0.0
        %1027 = vmatprep.mubr.f32.mxu0 0.0
        %1028 = vmatmul.mubr.f32.gmra.mrb[0].mxu0 %v916
        %v1029 = vpop.f32.mrb[0].mxu0
        %v1030 = vadd.f32 %v912, %v1029
        %v1031 = vpop.f32.mrb[0].mxu0
        %1032 = vmatprep.mubr.f32.mxu0 0.0
        %1033 = vmatmul.mubr.f32.gmra.mrb[0].mxu0 %v919
        %v1034 = vpop.f32.mrb[0].mxu0
        %v1035 = vadd.f32 %v912, %v1034
        %v1036 = vpop.f32.mrb[0].mxu0
        %1037 = vmatprep.mubr.f32.mxu0 0.0
        %1038 = vmatmul.mubr.f32.gmra.mrb[0].mxu0 %v922
        %v1039 = vpop.f32.mrb[0].mxu0
        %v1040 = vadd.f32 %v912, %v1039
        %v1041 = vpop.f32.mrb[0].mxu0
        %1042 = vmatprep.mubr.f32.mxu0 0.0
        %1043 = vmatmul.mubr.f32.gmra.mrb[0].mxu0 %v925
        %v1044 = vpop.f32.mrb[0].mxu0
        %v1045 = vadd.f32 %v912, %v1044
        %v1046 = vpop.f32.mrb[0].mxu0
        %1047 = vmatprep.mubr.f32.mxu0 0.0
        %1048 = vmatmul.mubr.f32.gmra.mrb[0].mxu0 %v928
        %v1049 = vpop.f32.mrb[0].mxu0
        %v1050 = vadd.f32 %v912, %v1049
        %v1051 = vpop.f32.mrb[0].mxu0
        %1052 = vmatprep.mubr.f32.mxu0 0.0
        %1053 = vmatmul.mubr.f32.gmra.mrb[0].mxu0 %v931
        %v1054 = vpop.f32.mrb[0].mxu0
        %v1055 = vadd.f32 %v912, %v1054
        %v1056 = vpop.f32.mrb[0].mxu0
        %1057 = vmatprep.mubr.f32.mxu0 0.0
        %1058 = vmatmul.mubr.f32.gmra.mrb[0].mxu0 %v934
        %v1059 = vpop.f32.mrb[0].mxu0
        %v1060 = vadd.f32 %v912, %v1059
        %v1061 = vpop.f32.mrb[0].mxu0
        %1062 = vmatprep.mubr.f32.mxu0 0.0
        %1063 = vmatmul.mubr.f32.gmra.mrb[0].mxu0 %v937
        %v1064 = vpop.f32.mrb[0].mxu0
        %v1065 = vadd.f32 %v912, %v1064
        %v1066 = vpop.f32.mrb[0].mxu0
        %1067 = vmatprep.mubr.f32.mxu0 0.0
        %1068 = vmatmul.mubr.f32.gmra.mrb[0].mxu0 %v940
        %v1069 = vpop.f32.mrb[0].mxu0
        %v1070 = vadd.f32 %v912, %v1069
        %v1071 = vpop.f32.mrb[0].mxu0
        %1072 = vmatprep.mubr.f32.mxu0 0.0
        %1073 = vmatmul.mubr.f32.gmra.mrb[0].mxu0 %v943
        %v1074 = vpop.f32.mrb[0].mxu0
        %v1075 = vadd.f32 %v912, %v1074
        %v1076 = vpop.f32.mrb[0].mxu0
        %1077 = vmatprep.mubr.f32.mxu0 0.0
        %1078 = vmatmul.mubr.f32.gmra.mrb[0].mxu0 %v946
        %v1079 = vpop.f32.mrb[0].mxu0
        %v1080 = vadd.f32 %v912, %v1079
        %v1081 = vpop.f32.mrb[0].mxu0
        %1082 = vmatprep.mubr.f32.mxu0 0.0
        %1083 = vmatmul.mubr.f32.gmra.mrb[0].mxu0 %v949
        %v1084 = vpop.f32.mrb[0].mxu0
        %v1085 = vadd.f32 %v912, %v1084
        %v1086 = vpop.f32.mrb[0].mxu0
        %1087 = vmatprep.mubr.f32.mxu0 0.0
        %1088 = vmatmul.mubr.f32.gmra.mrb[0].mxu0 %v952
        %v1089 = vpop.f32.mrb[0].mxu0
        %v1090 = vadd.f32 %v912, %v1089
        %v1091 = vpop.f32.mrb[0].mxu0
        %1092 = vmatprep.mubr.f32.mxu0 0.0
        %1093 = vmatmul.mubr.f32.gmra.mrb[0].mxu0 %v955
        %v1094 = vpop.f32.mrb[0].mxu0
        %v1095 = vadd.f32 %v912, %v1094
        %v1096 = vpop.f32.mrb[0].mxu0
        %1097 = vmatprep.mubr.f32.mxu0 0.0
        %1098 = vmatmul.mubr.f32.gmra.mrb[0].mxu0 %v958
        %v1099 = vpop.f32.mrb[0].mxu0
        %v1100 = vadd.f32 %v912, %v1099
        %v1101 = vpop.f32.mrb[0].mxu0
        %1102 = vmatprep.mubr.f32.mxu0 0.0
        %1103 = vmatmul.mubr.f32.gmra.mrb[0].mxu0 %v961
        %v1104 = vpop.f32.mrb[0].mxu0
        %v1105 = vadd.f32 %v912, %v1104
        %v1106 = vpop.f32.mrb[0].mxu0
        %1107 = vdwg.mxu0
        %v1116 = vrot.slane %v1040, 7
        %vm1117 = vcmask 1041409
        %v1118 = vsel %vm1117, %v1116, %v1030
        %v1119 = vrot.slane %v1050, 6
        %vm1120 = vcmask 1042434
        %v1121 = vsel %vm1120, %v1119, %v1118
        %v1122 = vrot.slane %v1060, 5
        %vm1123 = vcmask 1043459
        %v1124 = vsel %vm1123, %v1122, %v1121
        %v1125 = vrot.slane %v1070, 4
        %vm1126 = vcmask 1044484
        %v1127 = vsel %vm1126, %v1125, %v1124
        %v1128 = vrot.slane %v1080, 3
        %vm1129 = vcmask 1045509
        %v1130 = vsel %vm1129, %v1128, %v1127
        %v1131 = vrot.slane %v1090, 2
        %vm1132 = vcmask 1046534
        %v1133 = vsel %vm1132, %v1131, %v1130
        %v1134 = vrot.slane %v1100, 1
        %vm1135 = vcmask 1047559
        %v1136 = vsel %vm1135, %v1134, %v1133
        %vm1138 = vcmask 64512
        %1139 = vst.msk [vmem:[%s270] sm:$0xff] %vm1138, %v1136
        %v1140 = vrot.slane %v1030, 1
        %v1141 = vsel %vm1117, %v1040, %v1140
        %v1142 = vrot.slane %v1050, 7
        %v1143 = vsel %vm1120, %v1142, %v1141
        %v1144 = vrot.slane %v1060, 6
        %v1145 = vsel %vm1123, %v1144, %v1143
        %v1146 = vrot.slane %v1070, 5
        %v1147 = vsel %vm1126, %v1146, %v1145
        %v1148 = vrot.slane %v1080, 4
        %v1149 = vsel %vm1129, %v1148, %v1147
        %v1150 = vrot.slane %v1090, 3
        %v1151 = vsel %vm1132, %v1150, %v1149
        %v1152 = vrot.slane %v1100, 2
        %v1153 = vsel %vm1135, %v1152, %v1151
        %1154 = vrot.lane.b32.xlu0 %v1153, 8
        %v1155 = vpop.permute.xlu0 %1154
        %vm1157 = vcmask 130112
        %1158 = vst.msk [vmem:[%s270] sm:$0xff] %vm1157, %v1155
        %v1159 = vrot.slane %v1030, 2
        %v1160 = vrot.slane %v1040, 1
        %v1161 = vsel %vm1117, %v1160, %v1159
        %v1162 = vsel %vm1120, %v1050, %v1161
        %v1163 = vrot.slane %v1060, 7
        %v1164 = vsel %vm1123, %v1163, %v1162
        %v1165 = vrot.slane %v1070, 6
        %v1166 = vsel %vm1126, %v1165, %v1164
        %v1167 = vrot.slane %v1080, 5
        %v1168 = vsel %vm1129, %v1167, %v1166
        %v1169 = vrot.slane %v1090, 4
        %v1170 = vsel %vm1132, %v1169, %v1168
        %v1171 = vrot.slane %v1100, 3
        %v1172 = vsel %vm1135, %v1171, %v1170
        %1173 = vrot.lane.b32.xlu0 %v1172, 16
        %v1174 = vpop.permute.xlu0 %1173
        %vm1176 = vcmask 195712
        %1177 = vst.msk [vmem:[%s270] sm:$0xff] %vm1176, %v1174
        %v1178 = vrot.slane %v1030, 3
        %v1179 = vrot.slane %v1040, 2
        %v1180 = vsel %vm1117, %v1179, %v1178
        %v1181 = vrot.slane %v1050, 1
        %v1182 = vsel %vm1120, %v1181, %v1180
        %v1183 = vsel %vm1123, %v1060, %v1182
        %v1184 = vrot.slane %v1070, 7
        %v1185 = vsel %vm1126, %v1184, %v1183
        %v1186 = vrot.slane %v1080, 6
        %v1187 = vsel %vm1129, %v1186, %v1185
        %v1188 = vrot.slane %v1090, 5
        %v1189 = vsel %vm1132, %v1188, %v1187
        %v1190 = vrot.slane %v1100, 4
        %v1191 = vsel %vm1135, %v1190, %v1189
        %1192 = vrot.lane.b32.xlu0 %v1191, 24
        %v1193 = vpop.permute.xlu0 %1192
        %vm1195 = vcmask 261312
        %1196 = vst.msk [vmem:[%s270] sm:$0xff] %vm1195, %v1193
        %v1197 = vrot.slane %v1030, 4
        %v1198 = vrot.slane %v1040, 3
        %v1199 = vsel %vm1117, %v1198, %v1197
        %v1200 = vrot.slane %v1050, 2
        %v1201 = vsel %vm1120, %v1200, %v1199
        %v1202 = vrot.slane %v1060, 1
        %v1203 = vsel %vm1123, %v1202, %v1201
        %v1204 = vsel %vm1126, %v1070, %v1203
        %v1205 = vrot.slane %v1080, 7
        %v1206 = vsel %vm1129, %v1205, %v1204
        %v1207 = vrot.slane %v1090, 6
        %v1208 = vsel %vm1132, %v1207, %v1206
        %v1209 = vrot.slane %v1100, 5
        %v1210 = vsel %vm1135, %v1209, %v1208
        %1211 = vrot.lane.b32.xlu0 %v1210, 32
        %v1212 = vpop.permute.xlu0 %1211
        %vm1214 = vcmask 326912
        %1215 = vst.msk [vmem:[%s270] sm:$0xff] %vm1214, %v1212
        %v1216 = vrot.slane %v1030, 5
        %v1217 = vrot.slane %v1040, 4
        %v1218 = vsel %vm1117, %v1217, %v1216
        %v1219 = vrot.slane %v1050, 3
        %v1220 = vsel %vm1120, %v1219, %v1218
        %v1221 = vrot.slane %v1060, 2
        %v1222 = vsel %vm1123, %v1221, %v1220
        %v1223 = vrot.slane %v1070, 1
        %v1224 = vsel %vm1126, %v1223, %v1222
        %v1225 = vsel %vm1129, %v1080, %v1224
        %v1226 = vrot.slane %v1090, 7
        %v1227 = vsel %vm1132, %v1226, %v1225
        %v1228 = vrot.slane %v1100, 6
        %v1229 = vsel %vm1135, %v1228, %v1227
        %1230 = vrot.lane.b32.xlu0 %v1229, 40
        %v1231 = vpop.permute.xlu0 %1230
        %vm1233 = vcmask 392512
        %1234 = vst.msk [vmem:[%s270] sm:$0xff] %vm1233, %v1231
        %v1235 = vrot.slane %v1030, 6
        %v1236 = vrot.slane %v1040, 5
        %v1237 = vsel %vm1117, %v1236, %v1235
        %v1238 = vrot.slane %v1050, 4
        %v1239 = vsel %vm1120, %v1238, %v1237
        %v1240 = vrot.slane %v1060, 3
        %v1241 = vsel %vm1123, %v1240, %v1239
        %v1242 = vrot.slane %v1070, 2
        %v1243 = vsel %vm1126, %v1242, %v1241
        %v1244 = vrot.slane %v1080, 1
        %v1245 = vsel %vm1129, %v1244, %v1243
        %v1246 = vsel %vm1132, %v1090, %v1245
        %v1247 = vrot.slane %v1100, 7
        %v1248 = vsel %vm1135, %v1247, %v1246
        %1249 = vrot.lane.b32.xlu0 %v1248, 48
        %v1250 = vpop.permute.xlu0 %1249
        %vm1252 = vcmask 458112
        %1253 = vst.msk [vmem:[%s270] sm:$0xff] %vm1252, %v1250
        %v1254 = vrot.slane %v1030, 7
        %v1255 = vrot.slane %v1040, 6
        %v1256 = vsel %vm1117, %v1255, %v1254
        %v1257 = vrot.slane %v1050, 5
        %v1258 = vsel %vm1120, %v1257, %v1256
        %v1259 = vrot.slane %v1060, 4
        %v1260 = vsel %vm1123, %v1259, %v1258
        %v1261 = vrot.slane %v1070, 3
        %v1262 = vsel %vm1126, %v1261, %v1260
        %v1263 = vrot.slane %v1080, 2
        %v1264 = vsel %vm1129, %v1263, %v1262
        %v1265 = vrot.slane %v1090, 1
        %v1266 = vsel %vm1132, %v1265, %v1264
        %v1267 = vsel %vm1135, %v1100, %v1266
        %1268 = vrot.lane.b32.xlu0 %v1267, 56
        %v1269 = vpop.permute.xlu0 %1268
        %vm1271 = vcmask 523712
        %1272 = vst.msk [vmem:[%s270] sm:$0xff] %vm1271, %v1269
        %v1281 = vrot.slane %v1045, 7
        %v1282 = vsel %vm1117, %v1281, %v1035
        %v1283 = vrot.slane %v1055, 6
        %v1284 = vsel %vm1120, %v1283, %v1282
        %v1285 = vrot.slane %v1065, 5
        %v1286 = vsel %vm1123, %v1285, %v1284
        %v1287 = vrot.slane %v1075, 4
        %v1288 = vsel %vm1126, %v1287, %v1286
        %v1289 = vrot.slane %v1085, 3
        %v1290 = vsel %vm1129, %v1289, %v1288
        %v1291 = vrot.slane %v1095, 2
        %v1292 = vsel %vm1132, %v1291, %v1290
        %v1293 = vrot.slane %v1105, 1
        %v1294 = vsel %vm1135, %v1293, %v1292
        %1295 = vrot.lane.b32.xlu0 %v1294, 64
        %v1296 = vpop.permute.xlu0 %1295
        %vm1298 = vcmask 589312
        %1299 = vst.msk [vmem:[%s270] sm:$0xff] %vm1298, %v1296
        %v1300 = vrot.slane %v1035, 1
        %v1301 = vsel %vm1117, %v1045, %v1300
        %v1302 = vrot.slane %v1055, 7
        %v1303 = vsel %vm1120, %v1302, %v1301
        %v1304 = vrot.slane %v1065, 6
        %v1305 = vsel %vm1123, %v1304, %v1303
        %v1306 = vrot.slane %v1075, 5
        %v1307 = vsel %vm1126, %v1306, %v1305
        %v1308 = vrot.slane %v1085, 4
        %v1309 = vsel %vm1129, %v1308, %v1307
        %v1310 = vrot.slane %v1095, 3
        %v1311 = vsel %vm1132, %v1310, %v1309
        %v1312 = vrot.slane %v1105, 2
        %v1313 = vsel %vm1135, %v1312, %v1311
        %1314 = vrot.lane.b32.xlu0 %v1313, 72
        %v1315 = vpop.permute.xlu0 %1314
        %vm1317 = vcmask 654912
        %1318 = vst.msk [vmem:[%s270] sm:$0xff] %vm1317, %v1315
        %v1319 = vrot.slane %v1035, 2
        %v1320 = vrot.slane %v1045, 1
        %v1321 = vsel %vm1117, %v1320, %v1319
        %v1322 = vsel %vm1120, %v1055, %v1321
        %v1323 = vrot.slane %v1065, 7
        %v1324 = vsel %vm1123, %v1323, %v1322
        %v1325 = vrot.slane %v1075, 6
        %v1326 = vsel %vm1126, %v1325, %v1324
        %v1327 = vrot.slane %v1085, 5
        %v1328 = vsel %vm1129, %v1327, %v1326
        %v1329 = vrot.slane %v1095, 4
        %v1330 = vsel %vm1132, %v1329, %v1328
        %v1331 = vrot.slane %v1105, 3
        %v1332 = vsel %vm1135, %v1331, %v1330
        %1333 = vrot.lane.b32.xlu0 %v1332, 80
        %v1334 = vpop.permute.xlu0 %1333
        %vm1336 = vcmask 720512
        %1337 = vst.msk [vmem:[%s270] sm:$0xff] %vm1336, %v1334
        %v1338 = vrot.slane %v1035, 3
        %v1339 = vrot.slane %v1045, 2
        %v1340 = vsel %vm1117, %v1339, %v1338
        %v1341 = vrot.slane %v1055, 1
        %v1342 = vsel %vm1120, %v1341, %v1340
        %v1343 = vsel %vm1123, %v1065, %v1342
        %v1344 = vrot.slane %v1075, 7
        %v1345 = vsel %vm1126, %v1344, %v1343
        %v1346 = vrot.slane %v1085, 6
        %v1347 = vsel %vm1129, %v1346, %v1345
        %v1348 = vrot.slane %v1095, 5
        %v1349 = vsel %vm1132, %v1348, %v1347
        %v1350 = vrot.slane %v1105, 4
        %v1351 = vsel %vm1135, %v1350, %v1349
        %1352 = vrot.lane.b32.xlu0 %v1351, 88
        %v1353 = vpop.permute.xlu0 %1352
        %vm1355 = vcmask 786112
        %1356 = vst.msk [vmem:[%s270] sm:$0xff] %vm1355, %v1353
        %v1357 = vrot.slane %v1035, 4
        %v1358 = vrot.slane %v1045, 3
        %v1359 = vsel %vm1117, %v1358, %v1357
        %v1360 = vrot.slane %v1055, 2
        %v1361 = vsel %vm1120, %v1360, %v1359
        %v1362 = vrot.slane %v1065, 1
        %v1363 = vsel %vm1123, %v1362, %v1361
        %v1364 = vsel %vm1126, %v1075, %v1363
        %v1365 = vrot.slane %v1085, 7
        %v1366 = vsel %vm1129, %v1365, %v1364
        %v1367 = vrot.slane %v1095, 6
        %v1368 = vsel %vm1132, %v1367, %v1366
        %v1369 = vrot.slane %v1105, 5
        %v1370 = vsel %vm1135, %v1369, %v1368
        %1371 = vrot.lane.b32.xlu0 %v1370, 96
        %v1372 = vpop.permute.xlu0 %1371
        %vm1374 = vcmask 851712
        %1375 = vst.msk [vmem:[%s270] sm:$0xff] %vm1374, %v1372
        %v1376 = vrot.slane %v1035, 5
        %v1377 = vrot.slane %v1045, 4
        %v1378 = vsel %vm1117, %v1377, %v1376
        %v1379 = vrot.slane %v1055, 3
        %v1380 = vsel %vm1120, %v1379, %v1378
        %v1381 = vrot.slane %v1065, 2
        %v1382 = vsel %vm1123, %v1381, %v1380
        %v1383 = vrot.slane %v1075, 1
        %v1384 = vsel %vm1126, %v1383, %v1382
        %v1385 = vsel %vm1129, %v1085, %v1384
        %v1386 = vrot.slane %v1095, 7
        %v1387 = vsel %vm1132, %v1386, %v1385
        %v1388 = vrot.slane %v1105, 6
        %v1389 = vsel %vm1135, %v1388, %v1387
        %1390 = vrot.lane.b32.xlu0 %v1389, 104
        %v1391 = vpop.permute.xlu0 %1390
        %vm1393 = vcmask 917312
        %1394 = vst.msk [vmem:[%s270] sm:$0xff] %vm1393, %v1391
        %v1395 = vrot.slane %v1035, 6
        %v1396 = vrot.slane %v1045, 5
        %v1397 = vsel %vm1117, %v1396, %v1395
        %v1398 = vrot.slane %v1055, 4
        %v1399 = vsel %vm1120, %v1398, %v1397
        %v1400 = vrot.slane %v1065, 3
        %v1401 = vsel %vm1123, %v1400, %v1399
        %v1402 = vrot.slane %v1075, 2
        %v1403 = vsel %vm1126, %v1402, %v1401
        %v1404 = vrot.slane %v1085, 1
        %v1405 = vsel %vm1129, %v1404, %v1403
        %v1406 = vsel %vm1132, %v1095, %v1405
        %v1407 = vrot.slane %v1105, 7
        %v1408 = vsel %vm1135, %v1407, %v1406
        %1409 = vrot.lane.b32.xlu0 %v1408, 112
        %v1410 = vpop.permute.xlu0 %1409
        %vm1412 = vcmask 982912
        %1413 = vst.msk [vmem:[%s270] sm:$0xff] %vm1412, %v1410
        %v1414 = vrot.slane %v1035, 7
        %v1415 = vrot.slane %v1045, 6
        %v1416 = vsel %vm1117, %v1415, %v1414
        %v1417 = vrot.slane %v1055, 5
        %v1418 = vsel %vm1120, %v1417, %v1416
        %v1419 = vrot.slane %v1065, 4
        %v1420 = vsel %vm1123, %v1419, %v1418
        %v1421 = vrot.slane %v1075, 3
        %v1422 = vsel %vm1126, %v1421, %v1420
        %v1423 = vrot.slane %v1085, 2
        %v1424 = vsel %vm1129, %v1423, %v1422
        %v1425 = vrot.slane %v1095, 1
        %v1426 = vsel %vm1132, %v1425, %v1424
        %v1427 = vsel %vm1135, %v1105, %v1426
        %1428 = vrot.lane.b32.xlu0 %v1427, 120
        %v1429 = vpop.permute.xlu0 %1428
        %vm1431 = vcmask 1048512
        %1432 = vst.msk [vmem:[%s270] sm:$0xff] %vm1431, %v1429
        %v1433 = vld [vmem:[%s597] sm:$0xff]
        %v1434 = vld [vmem:[%s597 + $0x8] sm:$0xff]
        %v1435 = vld [vmem:[%s597 + $0x18] sm:$0xff]
        %v1436 = vld [vmem:[%s597 + $0x20] sm:$0xff]
        %v1437 = vld [vmem:[%s597 + $0x30] sm:$0xff]
        %v1438 = vld [vmem:[%s597 + $0x38] sm:$0xff]
        %v1439 = vld [vmem:[%s597 + $0x48] sm:$0xff]
        %v1440 = vld [vmem:[%s597 + $0x50] sm:$0xff]
        %v1441 = vld [vmem:[%s597 + $0x60] sm:$0xff]
        %v1442 = vld [vmem:[%s597 + $0x68] sm:$0xff]
        %v1443 = vld [vmem:[%s597 + $0x78] sm:$0xff]
        %v1444 = vld [vmem:[%s597 + $0x80] sm:$0xff]
        %v1445 = vld [vmem:[%s597 + $0x90] sm:$0xff]
        %v1446 = vld [vmem:[%s597 + $0x98] sm:$0xff]
        %v1447 = vld [vmem:[%s597 + $0xa8] sm:$0xff]
        %v1448 = vld [vmem:[%s597 + $0xb0] sm:$0xff]
        %1449 = vst.msk [vmem:[#allocation3] sm:$0xff] %vm331, %v1433
        %1450 = vst.msk [vmem:[#allocation3 + $0x8] sm:$0xff] %vm331, %v1434
        %1451 = vst.msk [vmem:[#allocation3 + $0x10] sm:$0xff] %vm331, %v1435
        %1452 = vst.msk [vmem:[#allocation3 + $0x18] sm:$0xff] %vm331, %v1436
        %1453 = vst.msk [vmem:[#allocation3 + $0x20] sm:$0xff] %vm331, %v1437
        %1454 = vst.msk [vmem:[#allocation3 + $0x28] sm:$0xff] %vm331, %v1438
        %1455 = vst.msk [vmem:[#allocation3 + $0x30] sm:$0xff] %vm331, %v1439
        %1456 = vst.msk [vmem:[#allocation3 + $0x38] sm:$0xff] %vm331, %v1440
        %1457 = vst.msk [vmem:[#allocation3 + $0x40] sm:$0xff] %vm331, %v1441
        %1458 = vst.msk [vmem:[#allocation3 + $0x48] sm:$0xff] %vm331, %v1442
        %1459 = vst.msk [vmem:[#allocation3 + $0x50] sm:$0xff] %vm331, %v1443
        %1460 = vst.msk [vmem:[#allocation3 + $0x58] sm:$0xff] %vm331, %v1444
        %1461 = vst.msk [vmem:[#allocation3 + $0x60] sm:$0xff] %vm331, %v1445
        %1462 = vst.msk [vmem:[#allocation3 + $0x68] sm:$0xff] %vm331, %v1446
        %1463 = vst.msk [vmem:[#allocation3 + $0x70] sm:$0xff] %vm331, %v1447
        %1464 = vst.msk [vmem:[#allocation3 + $0x78] sm:$0xff] %vm331, %v1448
        %v1465 = vld [vmem:[%s597 + $0x1] sm:$0xff]
        %v1466 = vld [vmem:[%s597 + $0x9] sm:$0xff]
        %v1467 = vld [vmem:[%s597 + $0x19] sm:$0xff]
        %v1468 = vld [vmem:[%s597 + $0x21] sm:$0xff]
        %v1469 = vld [vmem:[%s597 + $0x31] sm:$0xff]
        %v1470 = vld [vmem:[%s597 + $0x39] sm:$0xff]
        %v1471 = vld [vmem:[%s597 + $0x49] sm:$0xff]
        %v1472 = vld [vmem:[%s597 + $0x51] sm:$0xff]
        %v1473 = vld [vmem:[%s597 + $0x61] sm:$0xff]
        %v1474 = vld [vmem:[%s597 + $0x69] sm:$0xff]
        %v1475 = vld [vmem:[%s597 + $0x79] sm:$0xff]
        %v1476 = vld [vmem:[%s597 + $0x81] sm:$0xff]
        %v1477 = vld [vmem:[%s597 + $0x91] sm:$0xff]
        %v1478 = vld [vmem:[%s597 + $0x99] sm:$0xff]
        %v1479 = vld [vmem:[%s597 + $0xa9] sm:$0xff]
        %v1480 = vld [vmem:[%s597 + $0xb1] sm:$0xff]
        %1497 = vrot.lane.b32.xlu0 %v1465, 4
        %v1498 = vpop.permute.xlu0 %1497
        %1499 = vrot.lane.b32.xlu0 %v1466, 4
        %v1500 = vpop.permute.xlu0 %1499
        %1501 = vrot.lane.b32.xlu0 %v1467, 4
        %v1502 = vpop.permute.xlu0 %1501
        %1503 = vrot.lane.b32.xlu0 %v1468, 4
        %v1504 = vpop.permute.xlu0 %1503
        %1505 = vrot.lane.b32.xlu0 %v1469, 4
        %v1506 = vpop.permute.xlu0 %1505
        %1507 = vrot.lane.b32.xlu0 %v1470, 4
        %v1508 = vpop.permute.xlu0 %1507
        %1509 = vrot.lane.b32.xlu0 %v1471, 4
        %v1510 = vpop.permute.xlu0 %1509
        %1511 = vrot.lane.b32.xlu0 %v1472, 4
        %v1512 = vpop.permute.xlu0 %1511
        %1513 = vrot.lane.b32.xlu0 %v1473, 4
        %v1514 = vpop.permute.xlu0 %1513
        %1515 = vrot.lane.b32.xlu0 %v1474, 4
        %v1516 = vpop.permute.xlu0 %1515
        %1517 = vrot.lane.b32.xlu0 %v1475, 4
        %v1518 = vpop.permute.xlu0 %1517
        %1519 = vrot.lane.b32.xlu0 %v1476, 4
        %v1520 = vpop.permute.xlu0 %1519
        %1521 = vrot.lane.b32.xlu0 %v1477, 4
        %v1522 = vpop.permute.xlu0 %1521
        %1523 = vrot.lane.b32.xlu0 %v1478, 4
        %v1524 = vpop.permute.xlu0 %1523
        %1525 = vrot.lane.b32.xlu0 %v1479, 4
        %v1526 = vpop.permute.xlu0 %1525
        %1527 = vrot.lane.b32.xlu0 %v1480, 4
        %v1528 = vpop.permute.xlu0 %1527
        %1545 = vst.msk [vmem:[#allocation3] sm:$0xff] %vm483, %v1498
        %1546 = vst.msk [vmem:[#allocation3 + $0x8] sm:$0xff] %vm483, %v1500
        %1547 = vst.msk [vmem:[#allocation3 + $0x10] sm:$0xff] %vm483, %v1502
        %1548 = vst.msk [vmem:[#allocation3 + $0x18] sm:$0xff] %vm483, %v1504
        %1549 = vst.msk [vmem:[#allocation3 + $0x20] sm:$0xff] %vm483, %v1506
        %1550 = vst.msk [vmem:[#allocation3 + $0x28] sm:$0xff] %vm483, %v1508
        %1551 = vst.msk [vmem:[#allocation3 + $0x30] sm:$0xff] %vm483, %v1510
        %1552 = vst.msk [vmem:[#allocation3 + $0x38] sm:$0xff] %vm483, %v1512
        %1553 = vst.msk [vmem:[#allocation3 + $0x40] sm:$0xff] %vm483, %v1514
        %1554 = vst.msk [vmem:[#allocation3 + $0x48] sm:$0xff] %vm483, %v1516
        %1555 = vst.msk [vmem:[#allocation3 + $0x50] sm:$0xff] %vm483, %v1518
        %1556 = vst.msk [vmem:[#allocation3 + $0x58] sm:$0xff] %vm483, %v1520
        %1557 = vst.msk [vmem:[#allocation3 + $0x60] sm:$0xff] %vm483, %v1522
        %1558 = vst.msk [vmem:[#allocation3 + $0x68] sm:$0xff] %vm483, %v1524
        %1559 = vst.msk [vmem:[#allocation3 + $0x70] sm:$0xff] %vm483, %v1526
        %1560 = vst.msk [vmem:[#allocation3 + $0x78] sm:$0xff] %vm483, %v1528
        %v1561 = vld [vmem:[%s597 + $0x2] sm:$0xff]
        %v1562 = vld [vmem:[%s597 + $0xa] sm:$0xff]
        %v1563 = vld [vmem:[%s597 + $0x1a] sm:$0xff]
        %v1564 = vld [vmem:[%s597 + $0x22] sm:$0xff]
        %v1565 = vld [vmem:[%s597 + $0x32] sm:$0xff]
        %v1566 = vld [vmem:[%s597 + $0x3a] sm:$0xff]
        %v1567 = vld [vmem:[%s597 + $0x4a] sm:$0xff]
        %v1568 = vld [vmem:[%s597 + $0x52] sm:$0xff]
        %v1569 = vld [vmem:[%s597 + $0x62] sm:$0xff]
        %v1570 = vld [vmem:[%s597 + $0x6a] sm:$0xff]
        %v1571 = vld [vmem:[%s597 + $0x7a] sm:$0xff]
        %v1572 = vld [vmem:[%s597 + $0x82] sm:$0xff]
        %v1573 = vld [vmem:[%s597 + $0x92] sm:$0xff]
        %v1574 = vld [vmem:[%s597 + $0x9a] sm:$0xff]
        %v1575 = vld [vmem:[%s597 + $0xaa] sm:$0xff]
        %v1576 = vld [vmem:[%s597 + $0xb2] sm:$0xff]
        %1593 = vrot.lane.b32.xlu0 %v1561, 8
        %v1594 = vpop.permute.xlu0 %1593
        %1595 = vrot.lane.b32.xlu0 %v1562, 8
        %v1596 = vpop.permute.xlu0 %1595
        %1597 = vrot.lane.b32.xlu0 %v1563, 8
        %v1598 = vpop.permute.xlu0 %1597
        %1599 = vrot.lane.b32.xlu0 %v1564, 8
        %v1600 = vpop.permute.xlu0 %1599
        %1601 = vrot.lane.b32.xlu0 %v1565, 8
        %v1602 = vpop.permute.xlu0 %1601
        %1603 = vrot.lane.b32.xlu0 %v1566, 8
        %v1604 = vpop.permute.xlu0 %1603
        %1605 = vrot.lane.b32.xlu0 %v1567, 8
        %v1606 = vpop.permute.xlu0 %1605
        %1607 = vrot.lane.b32.xlu0 %v1568, 8
        %v1608 = vpop.permute.xlu0 %1607
        %1609 = vrot.lane.b32.xlu0 %v1569, 8
        %v1610 = vpop.permute.xlu0 %1609
        %1611 = vrot.lane.b32.xlu0 %v1570, 8
        %v1612 = vpop.permute.xlu0 %1611
        %1613 = vrot.lane.b32.xlu0 %v1571, 8
        %v1614 = vpop.permute.xlu0 %1613
        %1615 = vrot.lane.b32.xlu0 %v1572, 8
        %v1616 = vpop.permute.xlu0 %1615
        %1617 = vrot.lane.b32.xlu0 %v1573, 8
        %v1618 = vpop.permute.xlu0 %1617
        %1619 = vrot.lane.b32.xlu0 %v1574, 8
        %v1620 = vpop.permute.xlu0 %1619
        %1621 = vrot.lane.b32.xlu0 %v1575, 8
        %v1622 = vpop.permute.xlu0 %1621
        %1623 = vrot.lane.b32.xlu0 %v1576, 8
        %v1624 = vpop.permute.xlu0 %1623
        %1641 = vst.msk [vmem:[#allocation3] sm:$0xff] %vm580, %v1594
        %1642 = vst.msk [vmem:[#allocation3 + $0x8] sm:$0xff] %vm580, %v1596
        %1643 = vst.msk [vmem:[#allocation3 + $0x10] sm:$0xff] %vm580, %v1598
        %1644 = vst.msk [vmem:[#allocation3 + $0x18] sm:$0xff] %vm580, %v1600
        %1645 = vst.msk [vmem:[#allocation3 + $0x20] sm:$0xff] %vm580, %v1602
        %1646 = vst.msk [vmem:[#allocation3 + $0x28] sm:$0xff] %vm580, %v1604
        %1647 = vst.msk [vmem:[#allocation3 + $0x30] sm:$0xff] %vm580, %v1606
        %1648 = vst.msk [vmem:[#allocation3 + $0x38] sm:$0xff] %vm580, %v1608
        %1649 = vst.msk [vmem:[#allocation3 + $0x40] sm:$0xff] %vm580, %v1610
        %1650 = vst.msk [vmem:[#allocation3 + $0x48] sm:$0xff] %vm580, %v1612
        %1651 = vst.msk [vmem:[#allocation3 + $0x50] sm:$0xff] %vm580, %v1614
        %1652 = vst.msk [vmem:[#allocation3 + $0x58] sm:$0xff] %vm580, %v1616
        %1653 = vst.msk [vmem:[#allocation3 + $0x60] sm:$0xff] %vm580, %v1618
        %1654 = vst.msk [vmem:[#allocation3 + $0x68] sm:$0xff] %vm580, %v1620
        %1655 = vst.msk [vmem:[#allocation3 + $0x70] sm:$0xff] %vm580, %v1622
        %1656 = vst.msk [vmem:[#allocation3 + $0x78] sm:$0xff] %vm580, %v1624
        %s1657 = scalar_lea.vmem [#allocation2], 48
        %v1658 = vld [vmem:[%s1657] sm:$0xff]
        %v1659 = vld [vmem:[%s1657 + $0x8] sm:$0xff]
        %v1660 = vld [vmem:[%s1657 + $0x18] sm:$0xff]
        %v1661 = vld [vmem:[%s1657 + $0x20] sm:$0xff]
        %v1662 = vld [vmem:[%s1657 + $0x30] sm:$0xff]
        %v1663 = vld [vmem:[%s1657 + $0x38] sm:$0xff]
        %v1664 = vld [vmem:[%s1657 + $0x48] sm:$0xff]
        %v1665 = vld [vmem:[%s1657 + $0x50] sm:$0xff]
        %v1666 = vld [vmem:[%s1657 + $0x60] sm:$0xff]
        %v1667 = vld [vmem:[%s1657 + $0x68] sm:$0xff]
        %v1668 = vld [vmem:[%s1657 + $0x78] sm:$0xff]
        %v1669 = vld [vmem:[%s1657 + $0x80] sm:$0xff]
        %v1670 = vld [vmem:[%s1657 + $0x90] sm:$0xff]
        %v1671 = vld [vmem:[%s1657 + $0x98] sm:$0xff]
        %v1672 = vld [vmem:[%s1657 + $0xa8] sm:$0xff]
        %v1673 = vld [vmem:[%s1657 + $0xb0] sm:$0xff]
        %1690 = vrot.lane.b32.xlu0 %v1658, 12
        %v1691 = vpop.permute.xlu0 %1690
        %1692 = vrot.lane.b32.xlu0 %v1659, 12
        %v1693 = vpop.permute.xlu0 %1692
        %1694 = vrot.lane.b32.xlu0 %v1660, 12
        %v1695 = vpop.permute.xlu0 %1694
        %1696 = vrot.lane.b32.xlu0 %v1661, 12
        %v1697 = vpop.permute.xlu0 %1696
        %1698 = vrot.lane.b32.xlu0 %v1662, 12
        %v1699 = vpop.permute.xlu0 %1698
        %1700 = vrot.lane.b32.xlu0 %v1663, 12
        %v1701 = vpop.permute.xlu0 %1700
        %1702 = vrot.lane.b32.xlu0 %v1664, 12
        %v1703 = vpop.permute.xlu0 %1702
        %1704 = vrot.lane.b32.xlu0 %v1665, 12
        %v1705 = vpop.permute.xlu0 %1704
        %1706 = vrot.lane.b32.xlu0 %v1666, 12
        %v1707 = vpop.permute.xlu0 %1706
        %1708 = vrot.lane.b32.xlu0 %v1667, 12
        %v1709 = vpop.permute.xlu0 %1708
        %1710 = vrot.lane.b32.xlu0 %v1668, 12
        %v1711 = vpop.permute.xlu0 %1710
        %1712 = vrot.lane.b32.xlu0 %v1669, 12
        %v1713 = vpop.permute.xlu0 %1712
        %1714 = vrot.lane.b32.xlu0 %v1670, 12
        %v1715 = vpop.permute.xlu0 %1714
        %1716 = vrot.lane.b32.xlu0 %v1671, 12
        %v1717 = vpop.permute.xlu0 %1716
        %1718 = vrot.lane.b32.xlu0 %v1672, 12
        %v1719 = vpop.permute.xlu0 %1718
        %1720 = vrot.lane.b32.xlu0 %v1673, 12
        %v1721 = vpop.permute.xlu0 %1720
        %1738 = vst.msk [vmem:[#allocation3] sm:$0xff] %vm678, %v1691
        %1739 = vst.msk [vmem:[#allocation3 + $0x8] sm:$0xff] %vm678, %v1693
        %1740 = vst.msk [vmem:[#allocation3 + $0x10] sm:$0xff] %vm678, %v1695
        %1741 = vst.msk [vmem:[#allocation3 + $0x18] sm:$0xff] %vm678, %v1697
        %1742 = vst.msk [vmem:[#allocation3 + $0x20] sm:$0xff] %vm678, %v1699
        %1743 = vst.msk [vmem:[#allocation3 + $0x28] sm:$0xff] %vm678, %v1701
        %1744 = vst.msk [vmem:[#allocation3 + $0x30] sm:$0xff] %vm678, %v1703
        %1745 = vst.msk [vmem:[#allocation3 + $0x38] sm:$0xff] %vm678, %v1705
        %1746 = vst.msk [vmem:[#allocation3 + $0x40] sm:$0xff] %vm678, %v1707
        %1747 = vst.msk [vmem:[#allocation3 + $0x48] sm:$0xff] %vm678, %v1709
        %1748 = vst.msk [vmem:[#allocation3 + $0x50] sm:$0xff] %vm678, %v1711
        %1749 = vst.msk [vmem:[#allocation3 + $0x58] sm:$0xff] %vm678, %v1713
        %1750 = vst.msk [vmem:[#allocation3 + $0x60] sm:$0xff] %vm678, %v1715
        %1751 = vst.msk [vmem:[#allocation3 + $0x68] sm:$0xff] %vm678, %v1717
        %1752 = vst.msk [vmem:[#allocation3 + $0x70] sm:$0xff] %vm678, %v1719
        %1753 = vst.msk [vmem:[#allocation3 + $0x78] sm:$0xff] %vm678, %v1721
        %v1754 = vld [vmem:[%s1657 + $0x1] sm:$0xff]
        %v1755 = vld [vmem:[%s1657 + $0x9] sm:$0xff]
        %v1756 = vld [vmem:[%s1657 + $0x19] sm:$0xff]
        %v1757 = vld [vmem:[%s1657 + $0x21] sm:$0xff]
        %v1758 = vld [vmem:[%s1657 + $0x31] sm:$0xff]
        %v1759 = vld [vmem:[%s1657 + $0x39] sm:$0xff]
        %v1760 = vld [vmem:[%s1657 + $0x49] sm:$0xff]
        %v1761 = vld [vmem:[%s1657 + $0x51] sm:$0xff]
        %v1762 = vld [vmem:[%s1657 + $0x61] sm:$0xff]
        %v1763 = vld [vmem:[%s1657 + $0x69] sm:$0xff]
        %v1764 = vld [vmem:[%s1657 + $0x79] sm:$0xff]
        %v1765 = vld [vmem:[%s1657 + $0x81] sm:$0xff]
        %v1766 = vld [vmem:[%s1657 + $0x91] sm:$0xff]
        %v1767 = vld [vmem:[%s1657 + $0x99] sm:$0xff]
        %v1768 = vld [vmem:[%s1657 + $0xa9] sm:$0xff]
        %v1769 = vld [vmem:[%s1657 + $0xb1] sm:$0xff]
        %1786 = vrot.lane.b32.xlu0 %v1754, 16
        %v1787 = vpop.permute.xlu0 %1786
        %1788 = vrot.lane.b32.xlu0 %v1755, 16
        %v1789 = vpop.permute.xlu0 %1788
        %1790 = vrot.lane.b32.xlu0 %v1756, 16
        %v1791 = vpop.permute.xlu0 %1790
        %1792 = vrot.lane.b32.xlu0 %v1757, 16
        %v1793 = vpop.permute.xlu0 %1792
        %1794 = vrot.lane.b32.xlu0 %v1758, 16
        %v1795 = vpop.permute.xlu0 %1794
        %1796 = vrot.lane.b32.xlu0 %v1759, 16
        %v1797 = vpop.permute.xlu0 %1796
        %1798 = vrot.lane.b32.xlu0 %v1760, 16
        %v1799 = vpop.permute.xlu0 %1798
        %1800 = vrot.lane.b32.xlu0 %v1761, 16
        %v1801 = vpop.permute.xlu0 %1800
        %1802 = vrot.lane.b32.xlu0 %v1762, 16
        %v1803 = vpop.permute.xlu0 %1802
        %1804 = vrot.lane.b32.xlu0 %v1763, 16
        %v1805 = vpop.permute.xlu0 %1804
        %1806 = vrot.lane.b32.xlu0 %v1764, 16
        %v1807 = vpop.permute.xlu0 %1806
        %1808 = vrot.lane.b32.xlu0 %v1765, 16
        %v1809 = vpop.permute.xlu0 %1808
        %1810 = vrot.lane.b32.xlu0 %v1766, 16
        %v1811 = vpop.permute.xlu0 %1810
        %1812 = vrot.lane.b32.xlu0 %v1767, 16
        %v1813 = vpop.permute.xlu0 %1812
        %1814 = vrot.lane.b32.xlu0 %v1768, 16
        %v1815 = vpop.permute.xlu0 %1814
        %1816 = vrot.lane.b32.xlu0 %v1769, 16
        %v1817 = vpop.permute.xlu0 %1816
        %1834 = vst.msk [vmem:[#allocation3] sm:$0xff] %vm775, %v1787
        %1835 = vst.msk [vmem:[#allocation3 + $0x8] sm:$0xff] %vm775, %v1789
        %1836 = vst.msk [vmem:[#allocation3 + $0x10] sm:$0xff] %vm775, %v1791
        %1837 = vst.msk [vmem:[#allocation3 + $0x18] sm:$0xff] %vm775, %v1793
        %1838 = vst.msk [vmem:[#allocation3 + $0x20] sm:$0xff] %vm775, %v1795
        %1839 = vst.msk [vmem:[#allocation3 + $0x28] sm:$0xff] %vm775, %v1797
        %1840 = vst.msk [vmem:[#allocation3 + $0x30] sm:$0xff] %vm775, %v1799
        %1841 = vst.msk [vmem:[#allocation3 + $0x38] sm:$0xff] %vm775, %v1801
        %1842 = vst.msk [vmem:[#allocation3 + $0x40] sm:$0xff] %vm775, %v1803
        %1843 = vst.msk [vmem:[#allocation3 + $0x48] sm:$0xff] %vm775, %v1805
        %1844 = vst.msk [vmem:[#allocation3 + $0x50] sm:$0xff] %vm775, %v1807
        %1845 = vst.msk [vmem:[#allocation3 + $0x58] sm:$0xff] %vm775, %v1809
        %1846 = vst.msk [vmem:[#allocation3 + $0x60] sm:$0xff] %vm775, %v1811
        %1847 = vst.msk [vmem:[#allocation3 + $0x68] sm:$0xff] %vm775, %v1813
        %1848 = vst.msk [vmem:[#allocation3 + $0x70] sm:$0xff] %vm775, %v1815
        %1849 = vst.msk [vmem:[#allocation3 + $0x78] sm:$0xff] %vm775, %v1817
        %v1850 = vld [vmem:[%s1657 + $0x2] sm:$0xff]
        %v1851 = vld [vmem:[%s1657 + $0xa] sm:$0xff]
        %v1852 = vld [vmem:[%s1657 + $0x1a] sm:$0xff]
        %v1853 = vld [vmem:[%s1657 + $0x22] sm:$0xff]
        %v1854 = vld [vmem:[%s1657 + $0x32] sm:$0xff]
        %v1855 = vld [vmem:[%s1657 + $0x3a] sm:$0xff]
        %v1856 = vld [vmem:[%s1657 + $0x4a] sm:$0xff]
        %v1857 = vld [vmem:[%s1657 + $0x52] sm:$0xff]
        %v1858 = vld [vmem:[%s1657 + $0x62] sm:$0xff]
        %v1859 = vld [vmem:[%s1657 + $0x6a] sm:$0xff]
        %v1860 = vld [vmem:[%s1657 + $0x7a] sm:$0xff]
        %v1861 = vld [vmem:[%s1657 + $0x82] sm:$0xff]
        %v1862 = vld [vmem:[%s1657 + $0x92] sm:$0xff]
        %v1863 = vld [vmem:[%s1657 + $0x9a] sm:$0xff]
        %v1864 = vld [vmem:[%s1657 + $0xaa] sm:$0xff]
        %v1865 = vld [vmem:[%s1657 + $0xb2] sm:$0xff]
        %1882 = vrot.lane.b32.xlu0 %v1850, 20
        %v1883 = vpop.permute.xlu0 %1882
        %1884 = vrot.lane.b32.xlu0 %v1851, 20
        %v1885 = vpop.permute.xlu0 %1884
        %1886 = vrot.lane.b32.xlu0 %v1852, 20
        %v1887 = vpop.permute.xlu0 %1886
        %1888 = vrot.lane.b32.xlu0 %v1853, 20
        %v1889 = vpop.permute.xlu0 %1888
        %1890 = vrot.lane.b32.xlu0 %v1854, 20
        %v1891 = vpop.permute.xlu0 %1890
        %1892 = vrot.lane.b32.xlu0 %v1855, 20
        %v1893 = vpop.permute.xlu0 %1892
        %1894 = vrot.lane.b32.xlu0 %v1856, 20
        %v1895 = vpop.permute.xlu0 %1894
        %1896 = vrot.lane.b32.xlu0 %v1857, 20
        %v1897 = vpop.permute.xlu0 %1896
        %1898 = vrot.lane.b32.xlu0 %v1858, 20
        %v1899 = vpop.permute.xlu0 %1898
        %1900 = vrot.lane.b32.xlu0 %v1859, 20
        %v1901 = vpop.permute.xlu0 %1900
        %1902 = vrot.lane.b32.xlu0 %v1860, 20
        %v1903 = vpop.permute.xlu0 %1902
        %1904 = vrot.lane.b32.xlu0 %v1861, 20
        %v1905 = vpop.permute.xlu0 %1904
        %1906 = vrot.lane.b32.xlu0 %v1862, 20
        %v1907 = vpop.permute.xlu0 %1906
        %1908 = vrot.lane.b32.xlu0 %v1863, 20
        %v1909 = vpop.permute.xlu0 %1908
        %1910 = vrot.lane.b32.xlu0 %v1864, 20
        %v1911 = vpop.permute.xlu0 %1910
        %1912 = vrot.lane.b32.xlu0 %v1865, 20
        %v1913 = vpop.permute.xlu0 %1912
        %1930 = vst.msk [vmem:[#allocation3] sm:$0xff] %vm872, %v1883
        %1931 = vst.msk [vmem:[#allocation3 + $0x8] sm:$0xff] %vm872, %v1885
        %1932 = vst.msk [vmem:[#allocation3 + $0x10] sm:$0xff] %vm872, %v1887
        %1933 = vst.msk [vmem:[#allocation3 + $0x18] sm:$0xff] %vm872, %v1889
        %1934 = vst.msk [vmem:[#allocation3 + $0x20] sm:$0xff] %vm872, %v1891
        %1935 = vst.msk [vmem:[#allocation3 + $0x28] sm:$0xff] %vm872, %v1893
        %1936 = vst.msk [vmem:[#allocation3 + $0x30] sm:$0xff] %vm872, %v1895
        %1937 = vst.msk [vmem:[#allocation3 + $0x38] sm:$0xff] %vm872, %v1897
        %1938 = vst.msk [vmem:[#allocation3 + $0x40] sm:$0xff] %vm872, %v1899
        %1939 = vst.msk [vmem:[#allocation3 + $0x48] sm:$0xff] %vm872, %v1901
        %1940 = vst.msk [vmem:[#allocation3 + $0x50] sm:$0xff] %vm872, %v1903
        %1941 = vst.msk [vmem:[#allocation3 + $0x58] sm:$0xff] %vm872, %v1905
        %1942 = vst.msk [vmem:[#allocation3 + $0x60] sm:$0xff] %vm872, %v1907
        %1943 = vst.msk [vmem:[#allocation3 + $0x68] sm:$0xff] %vm872, %v1909
        %1944 = vst.msk [vmem:[#allocation3 + $0x70] sm:$0xff] %vm872, %v1911
        %1945 = vst.msk [vmem:[#allocation3 + $0x78] sm:$0xff] %vm872, %v1913
        %v1946 = vld [vmem:[#allocation3] sm:$0xff]
        %v1947 = vld [vmem:[#allocation3 + $0x8] sm:$0xff]
        %v1948 = vld [vmem:[#allocation3 + $0x10] sm:$0xff]
        %v1949 = vld [vmem:[#allocation3 + $0x18] sm:$0xff]
        %v1950 = vld [vmem:[#allocation3 + $0x20] sm:$0xff]
        %v1951 = vld [vmem:[#allocation3 + $0x28] sm:$0xff]
        %v1952 = vld [vmem:[#allocation3 + $0x30] sm:$0xff]
        %v1953 = vld [vmem:[#allocation3 + $0x38] sm:$0xff]
        %v1954 = vld [vmem:[#allocation3 + $0x40] sm:$0xff]
        %v1955 = vld [vmem:[#allocation3 + $0x48] sm:$0xff]
        %v1956 = vld [vmem:[#allocation3 + $0x50] sm:$0xff]
        %v1957 = vld [vmem:[#allocation3 + $0x58] sm:$0xff]
        %v1958 = vld [vmem:[#allocation3 + $0x60] sm:$0xff]
        %v1959 = vld [vmem:[#allocation3 + $0x68] sm:$0xff]
        %v1960 = vld [vmem:[#allocation3 + $0x70] sm:$0xff]
        %v1961 = vld [vmem:[#allocation3 + $0x78] sm:$0xff]
        %s1962 = scalar_lea.vmem %s2, 24
        %v1963 = vld [vmem:[%s1962] sm:$0xff]
        %v1964 = vld [vmem:[%s1962 + $0x8] sm:$0xff]
        %v1965 = vld [vmem:[%s1962 + $0x10] sm:$0xff]
        %v1967 = vsel %vm914, %v1946, 0
        %v1970 = vsel %vm914, %v1947, 0
        %v1973 = vsel %vm914, %v1948, 0
        %v1976 = vsel %vm914, %v1949, 0
        %v1979 = vsel %vm914, %v1950, 0
        %v1982 = vsel %vm914, %v1951, 0
        %v1985 = vsel %vm914, %v1952, 0
        %v1988 = vsel %vm914, %v1953, 0
        %v1991 = vsel %vm914, %v1954, 0
        %v1994 = vsel %vm914, %v1955, 0
        %v1997 = vsel %vm914, %v1956, 0
        %v2000 = vsel %vm914, %v1957, 0
        %v2003 = vsel %vm914, %v1958, 0
        %v2006 = vsel %vm914, %v1959, 0
        %v2009 = vsel %vm914, %v1960, 0
        %v2012 = vsel %vm914, %v1961, 0
        %2014 = vmatprep.subr.mxu0 0.0
        %2015 = vmatpush1.msra.mxu0 %v1963
        %2016 = vmatprep.subr.mxu0 0.0
        %2017 = vmatpush1.msra.mxu0 %v1964
        %2018 = vmatprep.subr.mxu0 0.0
        %2019 = vmatpush1.msra.mxu0 %v1965
        %2020 = vmatprep.subr.mxu0 0.0
        %2021 = vmatpush1.msra.mxu0 0.0
        %2022 = vmatprep.subr.mxu0 0.0
        %2023 = vmatpush1.msra.mxu0 0.0
        %2024 = vmatprep.subr.mxu0 0.0
        %2025 = vmatpush1.msra.mxu0 0.0
        %2026 = vmatprep.subr.mxu0 0.0
        %2027 = vmatpush1.msra.mxu0 0.0
        %2028 = vmatprep.subr.mxu0 0.0
        %2029 = vmatpush1.msra.mxu0 0.0
        %2030 = vmatprep.subr.mxu0 0.0
        %2031 = vmatpush1.msra.mxu0 0.0
        %2032 = vmatprep.subr.mxu0 0.0
        %2033 = vmatpush1.msra.mxu0 0.0
        %2034 = vmatprep.subr.mxu0 0.0
        %2035 = vmatpush1.msra.mxu0 0.0
        %2036 = vmatprep.subr.mxu0 0.0
        %2037 = vmatpush1.msra.mxu0 0.0
        %2038 = vmatprep.subr.mxu0 0.0
        %2039 = vmatpush1.msra.mxu0 0.0
        %2040 = vmatprep.subr.mxu0 0.0
        %2041 = vmatpush1.msra.mxu0 0.0
        %2042 = vmatprep.subr.mxu0 0.0
        %2043 = vmatpush1.msra.mxu0 0.0
        %2044 = vmatprep.subr.mxu0 0.0
        %2045 = vmatpush1.msra.mxu0 0.0
        %2046 = vmatprep.subr.mxu0 0.0
        %2047 = vmatpush1.msra.mxu0 0.0
        %2048 = vmatprep.subr.mxu0 0.0
        %2049 = vmatpush1.msra.mxu0 0.0
        %2050 = vmatprep.subr.mxu0 0.0
        %2051 = vmatpush1.msra.mxu0 0.0
        %2052 = vmatprep.subr.mxu0 0.0
        %2053 = vmatpush1.msra.mxu0 0.0
        %2054 = vmatprep.subr.mxu0 0.0
        %2055 = vmatpush1.msra.mxu0 0.0
        %2056 = vmatprep.subr.mxu0 0.0
        %2057 = vmatpush1.msra.mxu0 0.0
        %2058 = vmatprep.subr.mxu0 0.0
        %2059 = vmatpush1.msra.mxu0 0.0
        %2060 = vmatprep.subr.mxu0 0.0
        %2061 = vmatpush1.msra.mxu0 0.0
        %2062 = vmatprep.subr.mxu0 0.0
        %2063 = vmatpush1.msra.mxu0 0.0
        %2064 = vmatprep.subr.mxu0 0.0
        %2065 = vmatpush1.msra.mxu0 0.0
        %2066 = vmatprep.subr.mxu0 0.0
        %2067 = vmatpush1.msra.mxu0 0.0
        %2068 = vmatprep.subr.mxu0 0.0
        %2069 = vmatpush1.msra.mxu0 0.0
        %2070 = vmatprep.subr.mxu0 0.0
        %2071 = vmatpush1.msra.mxu0 0.0
        %2072 = vmatprep.subr.mxu0 0.0
        %2073 = vmatpush1.msra.mxu0 0.0
        %2074 = vmatprep.subr.mxu0 0.0
        %2075 = vmatpush1.msra.mxu0 0.0
        %2076 = vmatprep.subr.mxu0 0.0
        %2077 = vmatpush1.msra.mxu0 0.0
        %2078 = vmatprep.mubr.f32.mxu0 0.0
        %2079 = vmatmul.mubr.f32.gmra.mrb[0].mxu0 %v1967
        %v2080 = vpop.f32.mrb[0].mxu0
        %v2081 = vadd.f32 %v912, %v2080
        %v2082 = vpop.f32.mrb[0].mxu0
        %2083 = vmatprep.mubr.f32.mxu0 0.0
        %2084 = vmatmul.mubr.f32.gmra.mrb[0].mxu0 %v1970
        %v2085 = vpop.f32.mrb[0].mxu0
        %v2086 = vadd.f32 %v912, %v2085
        %v2087 = vpop.f32.mrb[0].mxu0
        %2088 = vmatprep.mubr.f32.mxu0 0.0
        %2089 = vmatmul.mubr.f32.gmra.mrb[0].mxu0 %v1973
        %v2090 = vpop.f32.mrb[0].mxu0
        %v2091 = vadd.f32 %v912, %v2090
        %v2092 = vpop.f32.mrb[0].mxu0
        %2093 = vmatprep.mubr.f32.mxu0 0.0
        %2094 = vmatmul.mubr.f32.gmra.mrb[0].mxu0 %v1976
        %v2095 = vpop.f32.mrb[0].mxu0
        %v2096 = vadd.f32 %v912, %v2095
        %v2097 = vpop.f32.mrb[0].mxu0
        %2098 = vmatprep.mubr.f32.mxu0 0.0
        %2099 = vmatmul.mubr.f32.gmra.mrb[0].mxu0 %v1979
        %v2100 = vpop.f32.mrb[0].mxu0
        %v2101 = vadd.f32 %v912, %v2100
        %v2102 = vpop.f32.mrb[0].mxu0
        %2103 = vmatprep.mubr.f32.mxu0 0.0
        %2104 = vmatmul.mubr.f32.gmra.mrb[0].mxu0 %v1982
        %v2105 = vpop.f32.mrb[0].mxu0
        %v2106 = vadd.f32 %v912, %v2105
        %v2107 = vpop.f32.mrb[0].mxu0
        %2108 = vmatprep.mubr.f32.mxu0 0.0
        %2109 = vmatmul.mubr.f32.gmra.mrb[0].mxu0 %v1985
        %v2110 = vpop.f32.mrb[0].mxu0
        %v2111 = vadd.f32 %v912, %v2110
        %v2112 = vpop.f32.mrb[0].mxu0
        %2113 = vmatprep.mubr.f32.mxu0 0.0
        %2114 = vmatmul.mubr.f32.gmra.mrb[0].mxu0 %v1988
        %v2115 = vpop.f32.mrb[0].mxu0
        %v2116 = vadd.f32 %v912, %v2115
        %v2117 = vpop.f32.mrb[0].mxu0
        %2118 = vmatprep.mubr.f32.mxu0 0.0
        %2119 = vmatmul.mubr.f32.gmra.mrb[0].mxu0 %v1991
        %v2120 = vpop.f32.mrb[0].mxu0
        %v2121 = vadd.f32 %v912, %v2120
        %v2122 = vpop.f32.mrb[0].mxu0
        %2123 = vmatprep.mubr.f32.mxu0 0.0
        %2124 = vmatmul.mubr.f32.gmra.mrb[0].mxu0 %v1994
        %v2125 = vpop.f32.mrb[0].mxu0
        %v2126 = vadd.f32 %v912, %v2125
        %v2127 = vpop.f32.mrb[0].mxu0
        %2128 = vmatprep.mubr.f32.mxu0 0.0
        %2129 = vmatmul.mubr.f32.gmra.mrb[0].mxu0 %v1997
        %v2130 = vpop.f32.mrb[0].mxu0
        %v2131 = vadd.f32 %v912, %v2130
        %v2132 = vpop.f32.mrb[0].mxu0
        %2133 = vmatprep.mubr.f32.mxu0 0.0
        %2134 = vmatmul.mubr.f32.gmra.mrb[0].mxu0 %v2000
        %v2135 = vpop.f32.mrb[0].mxu0
        %v2136 = vadd.f32 %v912, %v2135
        %v2137 = vpop.f32.mrb[0].mxu0
        %2138 = vmatprep.mubr.f32.mxu0 0.0
        %2139 = vmatmul.mubr.f32.gmra.mrb[0].mxu0 %v2003
        %v2140 = vpop.f32.mrb[0].mxu0
        %v2141 = vadd.f32 %v912, %v2140
        %v2142 = vpop.f32.mrb[0].mxu0
        %2143 = vmatprep.mubr.f32.mxu0 0.0
        %2144 = vmatmul.mubr.f32.gmra.mrb[0].mxu0 %v2006
        %v2145 = vpop.f32.mrb[0].mxu0
        %v2146 = vadd.f32 %v912, %v2145
        %v2147 = vpop.f32.mrb[0].mxu0
        %2148 = vmatprep.mubr.f32.mxu0 0.0
        %2149 = vmatmul.mubr.f32.gmra.mrb[0].mxu0 %v2009
        %v2150 = vpop.f32.mrb[0].mxu0
        %v2151 = vadd.f32 %v912, %v2150
        %v2152 = vpop.f32.mrb[0].mxu0
        %2153 = vmatprep.mubr.f32.mxu0 0.0
        %2154 = vmatmul.mubr.f32.gmra.mrb[0].mxu0 %v2012
        %v2155 = vpop.f32.mrb[0].mxu0
        %v2156 = vadd.f32 %v912, %v2155
        %v2157 = vpop.f32.mrb[0].mxu0
        %2158 = vdwg.mxu0
        %v2167 = vrot.slane %v2091, 7
        %v2168 = vsel %vm1117, %v2167, %v2081
        %v2169 = vrot.slane %v2101, 6
        %v2170 = vsel %vm1120, %v2169, %v2168
        %v2171 = vrot.slane %v2111, 5
        %v2172 = vsel %vm1123, %v2171, %v2170
        %v2173 = vrot.slane %v2121, 4
        %v2174 = vsel %vm1126, %v2173, %v2172
        %v2175 = vrot.slane %v2131, 3
        %v2176 = vsel %vm1129, %v2175, %v2174
        %v2177 = vrot.slane %v2141, 2
        %v2178 = vsel %vm1132, %v2177, %v2176
        %v2179 = vrot.slane %v2151, 1
        %v2180 = vsel %vm1135, %v2179, %v2178
        %2182 = vst.msk [vmem:[%s270 + $0x8] sm:$0xff] %vm1138, %v2180
        %v2183 = vrot.slane %v2081, 1
        %v2184 = vsel %vm1117, %v2091, %v2183
        %v2185 = vrot.slane %v2101, 7
        %v2186 = vsel %vm1120, %v2185, %v2184
        %v2187 = vrot.slane %v2111, 6
        %v2188 = vsel %vm1123, %v2187, %v2186
        %v2189 = vrot.slane %v2121, 5
        %v2190 = vsel %vm1126, %v2189, %v2188
        %v2191 = vrot.slane %v2131, 4
        %v2192 = vsel %vm1129, %v2191, %v2190
        %v2193 = vrot.slane %v2141, 3
        %v2194 = vsel %vm1132, %v2193, %v2192
        %v2195 = vrot.slane %v2151, 2
        %v2196 = vsel %vm1135, %v2195, %v2194
        %2197 = vrot.lane.b32.xlu0 %v2196, 8
        %v2198 = vpop.permute.xlu0 %2197
        %2200 = vst.msk [vmem:[%s270 + $0x8] sm:$0xff] %vm1157, %v2198
        %v2201 = vrot.slane %v2081, 2
        %v2202 = vrot.slane %v2091, 1
        %v2203 = vsel %vm1117, %v2202, %v2201
        %v2204 = vsel %vm1120, %v2101, %v2203
        %v2205 = vrot.slane %v2111, 7
        %v2206 = vsel %vm1123, %v2205, %v2204
        %v2207 = vrot.slane %v2121, 6
        %v2208 = vsel %vm1126, %v2207, %v2206
        %v2209 = vrot.slane %v2131, 5
        %v2210 = vsel %vm1129, %v2209, %v2208
        %v2211 = vrot.slane %v2141, 4
        %v2212 = vsel %vm1132, %v2211, %v2210
        %v2213 = vrot.slane %v2151, 3
        %v2214 = vsel %vm1135, %v2213, %v2212
        %2215 = vrot.lane.b32.xlu0 %v2214, 16
        %v2216 = vpop.permute.xlu0 %2215
        %2218 = vst.msk [vmem:[%s270 + $0x8] sm:$0xff] %vm1176, %v2216
        %v2219 = vrot.slane %v2081, 3
        %v2220 = vrot.slane %v2091, 2
        %v2221 = vsel %vm1117, %v2220, %v2219
        %v2222 = vrot.slane %v2101, 1
        %v2223 = vsel %vm1120, %v2222, %v2221
        %v2224 = vsel %vm1123, %v2111, %v2223
        %v2225 = vrot.slane %v2121, 7
        %v2226 = vsel %vm1126, %v2225, %v2224
        %v2227 = vrot.slane %v2131, 6
        %v2228 = vsel %vm1129, %v2227, %v2226
        %v2229 = vrot.slane %v2141, 5
        %v2230 = vsel %vm1132, %v2229, %v2228
        %v2231 = vrot.slane %v2151, 4
        %v2232 = vsel %vm1135, %v2231, %v2230
        %2233 = vrot.lane.b32.xlu0 %v2232, 24
        %v2234 = vpop.permute.xlu0 %2233
        %2236 = vst.msk [vmem:[%s270 + $0x8] sm:$0xff] %vm1195, %v2234
        %v2237 = vrot.slane %v2081, 4
        %v2238 = vrot.slane %v2091, 3
        %v2239 = vsel %vm1117, %v2238, %v2237
        %v2240 = vrot.slane %v2101, 2
        %v2241 = vsel %vm1120, %v2240, %v2239
        %v2242 = vrot.slane %v2111, 1
        %v2243 = vsel %vm1123, %v2242, %v2241
        %v2244 = vsel %vm1126, %v2121, %v2243
        %v2245 = vrot.slane %v2131, 7
        %v2246 = vsel %vm1129, %v2245, %v2244
        %v2247 = vrot.slane %v2141, 6
        %v2248 = vsel %vm1132, %v2247, %v2246
        %v2249 = vrot.slane %v2151, 5
        %v2250 = vsel %vm1135, %v2249, %v2248
        %2251 = vrot.lane.b32.xlu0 %v2250, 32
        %v2252 = vpop.permute.xlu0 %2251
        %2254 = vst.msk [vmem:[%s270 + $0x8] sm:$0xff] %vm1214, %v2252
        %v2255 = vrot.slane %v2081, 5
        %v2256 = vrot.slane %v2091, 4
        %v2257 = vsel %vm1117, %v2256, %v2255
        %v2258 = vrot.slane %v2101, 3
        %v2259 = vsel %vm1120, %v2258, %v2257
        %v2260 = vrot.slane %v2111, 2
        %v2261 = vsel %vm1123, %v2260, %v2259
        %v2262 = vrot.slane %v2121, 1
        %v2263 = vsel %vm1126, %v2262, %v2261
        %v2264 = vsel %vm1129, %v2131, %v2263
        %v2265 = vrot.slane %v2141, 7
        %v2266 = vsel %vm1132, %v2265, %v2264
        %v2267 = vrot.slane %v2151, 6
        %v2268 = vsel %vm1135, %v2267, %v2266
        %2269 = vrot.lane.b32.xlu0 %v2268, 40
        %v2270 = vpop.permute.xlu0 %2269
        %2272 = vst.msk [vmem:[%s270 + $0x8] sm:$0xff] %vm1233, %v2270
        %v2273 = vrot.slane %v2081, 6
        %v2274 = vrot.slane %v2091, 5
        %v2275 = vsel %vm1117, %v2274, %v2273
        %v2276 = vrot.slane %v2101, 4
        %v2277 = vsel %vm1120, %v2276, %v2275
        %v2278 = vrot.slane %v2111, 3
        %v2279 = vsel %vm1123, %v2278, %v2277
        %v2280 = vrot.slane %v2121, 2
        %v2281 = vsel %vm1126, %v2280, %v2279
        %v2282 = vrot.slane %v2131, 1
        %v2283 = vsel %vm1129, %v2282, %v2281
        %v2284 = vsel %vm1132, %v2141, %v2283
        %v2285 = vrot.slane %v2151, 7
        %v2286 = vsel %vm1135, %v2285, %v2284
        %2287 = vrot.lane.b32.xlu0 %v2286, 48
        %v2288 = vpop.permute.xlu0 %2287
        %2290 = vst.msk [vmem:[%s270 + $0x8] sm:$0xff] %vm1252, %v2288
        %v2291 = vrot.slane %v2081, 7
        %v2292 = vrot.slane %v2091, 6
        %v2293 = vsel %vm1117, %v2292, %v2291
        %v2294 = vrot.slane %v2101, 5
        %v2295 = vsel %vm1120, %v2294, %v2293
        %v2296 = vrot.slane %v2111, 4
        %v2297 = vsel %vm1123, %v2296, %v2295
        %v2298 = vrot.slane %v2121, 3
        %v2299 = vsel %vm1126, %v2298, %v2297
        %v2300 = vrot.slane %v2131, 2
        %v2301 = vsel %vm1129, %v2300, %v2299
        %v2302 = vrot.slane %v2141, 1
        %v2303 = vsel %vm1132, %v2302, %v2301
        %v2304 = vsel %vm1135, %v2151, %v2303
        %2305 = vrot.lane.b32.xlu0 %v2304, 56
        %v2306 = vpop.permute.xlu0 %2305
        %2308 = vst.msk [vmem:[%s270 + $0x8] sm:$0xff] %vm1271, %v2306
        %v2317 = vrot.slane %v2096, 7
        %v2318 = vsel %vm1117, %v2317, %v2086
        %v2319 = vrot.slane %v2106, 6
        %v2320 = vsel %vm1120, %v2319, %v2318
        %v2321 = vrot.slane %v2116, 5
        %v2322 = vsel %vm1123, %v2321, %v2320
        %v2323 = vrot.slane %v2126, 4
        %v2324 = vsel %vm1126, %v2323, %v2322
        %v2325 = vrot.slane %v2136, 3
        %v2326 = vsel %vm1129, %v2325, %v2324
        %v2327 = vrot.slane %v2146, 2
        %v2328 = vsel %vm1132, %v2327, %v2326
        %v2329 = vrot.slane %v2156, 1
        %v2330 = vsel %vm1135, %v2329, %v2328
        %2331 = vrot.lane.b32.xlu0 %v2330, 64
        %v2332 = vpop.permute.xlu0 %2331
        %2334 = vst.msk [vmem:[%s270 + $0x8] sm:$0xff] %vm1298, %v2332
        %v2335 = vrot.slane %v2086, 1
        %v2336 = vsel %vm1117, %v2096, %v2335
        %v2337 = vrot.slane %v2106, 7
        %v2338 = vsel %vm1120, %v2337, %v2336
        %v2339 = vrot.slane %v2116, 6
        %v2340 = vsel %vm1123, %v2339, %v2338
        %v2341 = vrot.slane %v2126, 5
        %v2342 = vsel %vm1126, %v2341, %v2340
        %v2343 = vrot.slane %v2136, 4
        %v2344 = vsel %vm1129, %v2343, %v2342
        %v2345 = vrot.slane %v2146, 3
        %v2346 = vsel %vm1132, %v2345, %v2344
        %v2347 = vrot.slane %v2156, 2
        %v2348 = vsel %vm1135, %v2347, %v2346
        %2349 = vrot.lane.b32.xlu0 %v2348, 72
        %v2350 = vpop.permute.xlu0 %2349
        %2352 = vst.msk [vmem:[%s270 + $0x8] sm:$0xff] %vm1317, %v2350
        %v2353 = vrot.slane %v2086, 2
        %v2354 = vrot.slane %v2096, 1
        %v2355 = vsel %vm1117, %v2354, %v2353
        %v2356 = vsel %vm1120, %v2106, %v2355
        %v2357 = vrot.slane %v2116, 7
        %v2358 = vsel %vm1123, %v2357, %v2356
        %v2359 = vrot.slane %v2126, 6
        %v2360 = vsel %vm1126, %v2359, %v2358
        %v2361 = vrot.slane %v2136, 5
        %v2362 = vsel %vm1129, %v2361, %v2360
        %v2363 = vrot.slane %v2146, 4
        %v2364 = vsel %vm1132, %v2363, %v2362
        %v2365 = vrot.slane %v2156, 3
        %v2366 = vsel %vm1135, %v2365, %v2364
        %2367 = vrot.lane.b32.xlu0 %v2366, 80
        %v2368 = vpop.permute.xlu0 %2367
        %2370 = vst.msk [vmem:[%s270 + $0x8] sm:$0xff] %vm1336, %v2368
        %v2371 = vrot.slane %v2086, 3
        %v2372 = vrot.slane %v2096, 2
        %v2373 = vsel %vm1117, %v2372, %v2371
        %v2374 = vrot.slane %v2106, 1
        %v2375 = vsel %vm1120, %v2374, %v2373
        %v2376 = vsel %vm1123, %v2116, %v2375
        %v2377 = vrot.slane %v2126, 7
        %v2378 = vsel %vm1126, %v2377, %v2376
        %v2379 = vrot.slane %v2136, 6
        %v2380 = vsel %vm1129, %v2379, %v2378
        %v2381 = vrot.slane %v2146, 5
        %v2382 = vsel %vm1132, %v2381, %v2380
        %v2383 = vrot.slane %v2156, 4
        %v2384 = vsel %vm1135, %v2383, %v2382
        %2385 = vrot.lane.b32.xlu0 %v2384, 88
        %v2386 = vpop.permute.xlu0 %2385
        %2388 = vst.msk [vmem:[%s270 + $0x8] sm:$0xff] %vm1355, %v2386
        %v2389 = vrot.slane %v2086, 4
        %v2390 = vrot.slane %v2096, 3
        %v2391 = vsel %vm1117, %v2390, %v2389
        %v2392 = vrot.slane %v2106, 2
        %v2393 = vsel %vm1120, %v2392, %v2391
        %v2394 = vrot.slane %v2116, 1
        %v2395 = vsel %vm1123, %v2394, %v2393
        %v2396 = vsel %vm1126, %v2126, %v2395
        %v2397 = vrot.slane %v2136, 7
        %v2398 = vsel %vm1129, %v2397, %v2396
        %v2399 = vrot.slane %v2146, 6
        %v2400 = vsel %vm1132, %v2399, %v2398
        %v2401 = vrot.slane %v2156, 5
        %v2402 = vsel %vm1135, %v2401, %v2400
        %2403 = vrot.lane.b32.xlu0 %v2402, 96
        %v2404 = vpop.permute.xlu0 %2403
        %2406 = vst.msk [vmem:[%s270 + $0x8] sm:$0xff] %vm1374, %v2404
        %v2407 = vrot.slane %v2086, 5
        %v2408 = vrot.slane %v2096, 4
        %v2409 = vsel %vm1117, %v2408, %v2407
        %v2410 = vrot.slane %v2106, 3
        %v2411 = vsel %vm1120, %v2410, %v2409
        %v2412 = vrot.slane %v2116, 2
        %v2413 = vsel %vm1123, %v2412, %v2411
        %v2414 = vrot.slane %v2126, 1
        %v2415 = vsel %vm1126, %v2414, %v2413
        %v2416 = vsel %vm1129, %v2136, %v2415
        %v2417 = vrot.slane %v2146, 7
        %v2418 = vsel %vm1132, %v2417, %v2416
        %v2419 = vrot.slane %v2156, 6
        %v2420 = vsel %vm1135, %v2419, %v2418
        %2421 = vrot.lane.b32.xlu0 %v2420, 104
        %v2422 = vpop.permute.xlu0 %2421
        %2424 = vst.msk [vmem:[%s270 + $0x8] sm:$0xff] %vm1393, %v2422
        %v2425 = vrot.slane %v2086, 6
        %v2426 = vrot.slane %v2096, 5
        %v2427 = vsel %vm1117, %v2426, %v2425
        %v2428 = vrot.slane %v2106, 4
        %v2429 = vsel %vm1120, %v2428, %v2427
        %v2430 = vrot.slane %v2116, 3
        %v2431 = vsel %vm1123, %v2430, %v2429
        %v2432 = vrot.slane %v2126, 2
        %v2433 = vsel %vm1126, %v2432, %v2431
        %v2434 = vrot.slane %v2136, 1
        %v2435 = vsel %vm1129, %v2434, %v2433
        %v2436 = vsel %vm1132, %v2146, %v2435
        %v2437 = vrot.slane %v2156, 7
        %v2438 = vsel %vm1135, %v2437, %v2436
        %2439 = vrot.lane.b32.xlu0 %v2438, 112
        %v2440 = vpop.permute.xlu0 %2439
        %2442 = vst.msk [vmem:[%s270 + $0x8] sm:$0xff] %vm1412, %v2440
        %v2443 = vrot.slane %v2086, 7
        %v2444 = vrot.slane %v2096, 6
        %v2445 = vsel %vm1117, %v2444, %v2443
        %v2446 = vrot.slane %v2106, 5
        %v2447 = vsel %vm1120, %v2446, %v2445
        %v2448 = vrot.slane %v2116, 4
        %v2449 = vsel %vm1123, %v2448, %v2447
        %v2450 = vrot.slane %v2126, 3
        %v2451 = vsel %vm1126, %v2450, %v2449
        %v2452 = vrot.slane %v2136, 2
        %v2453 = vsel %vm1129, %v2452, %v2451
        %v2454 = vrot.slane %v2146, 1
        %v2455 = vsel %vm1132, %v2454, %v2453
        %v2456 = vsel %vm1135, %v2156, %v2455
        %2457 = vrot.lane.b32.xlu0 %v2456, 120
        %v2458 = vpop.permute.xlu0 %2457
        %2460 = vst.msk [vmem:[%s270 + $0x8] sm:$0xff] %vm1431, %v2458
        %s2461 = sand.u32 %s142, 1
        %s2462 = scalar_lea.sflag [#allocation5], %s2461
        %s2463 = sand.u32 %s142, 1
        %s2464 = smul.addr %s2463, 16
        %s2465 = scalar_lea.vmem [#allocation4], %s2464
        // Predicated region
        $region37: #{tpu_custom_call.1} parent=35 // pred_check
          %p2466 = pneg %p152
        $region38: #{tpu_custom_call.1} parent=35 // pred_check_branch
          %2468 = sbr.rel (%p2466) target = $region40
        $region39: #{tpu_custom_call.1} parent=35 // pred_region
          %s2470 = ssub.s32 256, 256
          %2471 = vsyncadd %s2462, %s2470
          %s2472 = smul.addr %s23, 2
          %s2473 = smul.addr %s22, 4
          %s2474 = sadd.s32 %s2472, %s2473
          %s2475 = smul.addr %s2474, 128
          %s2476 = scalar_lea.hbm %s4, %s2475
          %s2478 = sshll.u32 %s2465, 4
          %s2479 = int_to_ptr.vmem [resolvable:$true] %s2478
          %2481 = dma.vmem_to_hbm [thread:$0]  %s2479, 256, %s2476, %s2462
        $region40: #{tpu_custom_call.1} parent=35 // pred_fallthru
          _
      $region36: #{tpu_custom_call.1} parent=5 // pred_fallthru
        _
      %p2482 = scmp.le.s32.totalorder 2, %s13
      // Predicated region
      $region41: #{tpu_custom_call.1} parent=5 // pred_check
        %p2483 = pneg %p2482
      $region42: #{tpu_custom_call.1} parent=5 // pred_check_branch
        %2485 = sbr.rel (%p2483) target = $region44
      $region43: #{tpu_custom_call.1} parent=5 // pred_region
        %s2486 = ssub.s32 %s13, 2
        // Predicated region
        $region45: #{tpu_custom_call.1} parent=43 // pred_check
          %p2487 = pneg %p158
        $region46: #{tpu_custom_call.1} parent=43 // pred_check_branch
          %2489 = sbr.rel (%p2487) target = $region48
        $region47: #{tpu_custom_call.1} parent=43 // pred_region
          %s2490 = sand.u32 %s143, 1
          %s2491 = scalar_lea.sflag [#allocation5], %s2490
          %s2492 = sand.u32 %s143, 1
          %s2493 = smul.addr %s2492, 16
          %s2494 = scalar_lea.vmem [#allocation4], %s2493
          %2495 = dma.done %s2491, 256
        $region48: #{tpu_custom_call.1} parent=43 // pred_fallthru
          _
      $region44: #{tpu_custom_call.1} parent=5 // pred_fallthru
        _
    $region6: #{tpu_custom_call.1} parent=1 // loop_footer
      %s17 = sadd.s32 1, %s13
    $region7: #{tpu_custom_call.1} parent=1 // loop_footer_branch
      %12 = sbr.rel target = $region3
    $region8: #{tpu_custom_call.1} parent=1 // loop_exit
      _
    %2496 = vsyncpa [#allocation5], 1
    %s2497 = scalar_lea.sflag [#allocation5], 1
    %2498 = vsyncpa %s2497, 1

</llo_original>
